<compile_context>
chip_gen: v6e
topology: v6e:2x2x1
jax: 0.10.0
libtpu: 0.0.40
codegen_flags: <defaults>
</compile_context>

<pallas_src>
import functools

import jax
import jax.numpy as jnp
from jax.experimental import pallas as pl
from jax.experimental.pallas import tpu as pltpu


def _round_up(n, m):
    return ((n + m - 1) // m) * m


def _pad2d(a, rows, cols):
    return jnp.pad(a, ((0, rows - a.shape[0]), (0, cols - a.shape[1])))


def _largest_tile(total, cap):
    """Largest multiple-of-128 divisor of `total` that is <= cap (>=128)."""
    best = 128
    t = 128
    while t <= min(total, cap):
        if total % t == 0:
            best = t
        t += 128
    return best


def _vmem_capacity_bytes():
    try:
        return int(pltpu.get_tpu_info().vmem_capacity_bytes)
    except Exception:                       # best-effort hardware query
        return 64 << 20                     # conservative (v7x per-TC) fallback


# --------------------------------------------------------------------------- #
# Kernel
# --------------------------------------------------------------------------- #
def predictor_kernel(x_ref,
                     pw1_ref, pb1_ref, pw2_ref, pb2_ref,
                     ww1_ref, wb1_ref, ww2_ref, wb2_ref,
                     cw1_ref, cb1_ref, cw2_ref, cb2_ref,
                     points_ref, widths_ref, colors_ref,
                     hp_ref,
                     *, half, max_width):
    j = pl.program_id(1)
    nj = pl.num_programs(1)

    # --- once per batch tile: points-head first layer, cached across N tiles.
    @pl.when(j == 0)
    def _points_first_layer():
        hp = jnp.dot(x_ref[...], pw1_ref[...],
                     preferred_element_type=jnp.float32)
        hp = jnp.maximum(hp + pb1_ref[...], 0.0)       # bias + ReLU in f32
        hp_ref[...] = hp.astype(hp_ref.dtype)          # bf16 operand for 2nd layer

    # --- every grid step: one lane-dense N tile of the big points head.
    p = jnp.dot(hp_ref[...], pw2_ref[...],
                preferred_element_type=jnp.float32) + pb2_ref[...]
    points_ref[...] = (jnp.tanh(p) * half + half).astype(points_ref.dtype)

    # --- once per batch tile (finalize step): the small widths / colors heads.
    @pl.when(j == nj - 1)
    def _small_heads():
        x = x_ref[...]

        hw = jnp.dot(x, ww1_ref[...], preferred_element_type=jnp.float32)
        hw = jnp.maximum(hw + wb1_ref[...], 0.0).astype(ww2_ref.dtype)
        w = jnp.dot(hw, ww2_ref[...],
                    preferred_element_type=jnp.float32) + wb2_ref[...]
        sig = 0.5 * (jnp.tanh(0.5 * w) + 1.0)          # exact sigmoid, one EUP op
        widths_ref[...] = ((max_width - 1.0) * sig + 1.0).astype(widths_ref.dtype)

        hc = jnp.dot(x, cw1_ref[...], preferred_element_type=jnp.float32)
        hc = jnp.maximum(hc + cb1_ref[...], 0.0).astype(cw2_ref.dtype)
        c = jnp.dot(hc, cw2_ref[...],
                    preferred_element_type=jnp.float32) + cb2_ref[...]
        colors_ref[...] = jnp.clip(c, 0.0, 1.0).astype(colors_ref.dtype)


# --------------------------------------------------------------------------- #
# One-time parameter preparation (hoisted out of the per-call path)
# --------------------------------------------------------------------------- #
def prepare_params(params, matmul_dtype=jnp.bfloat16):
    """Pad every feature dim to a multiple of 128 and cast matmul operands once."""
    zdim = params["pw1"].shape[0]
    points_dim = params["pw2"].shape[1]
    widths_dim = params["ww2"].shape[1]
    colors_dim = params["cw2"].shape[1]

    zp = _round_up(zdim, 128)
    pp = _round_up(points_dim, 128)
    wp = _round_up(widths_dim, 128)
    cp = _round_up(colors_dim, 128)

    def w(name, rows, cols):
        return _pad2d(params[name], rows, cols).astype(matmul_dtype)

    def b(name, cols):
        return _pad2d(params[name], 1, cols).astype(jnp.float32)

    prepped = {
        "pw1": w("pw1", zp, zp), "pb1": b("pb1", zp),
        "pw2": w("pw2", zp, pp), "pb2": b("pb2", pp),
        "ww1": w("ww1", zp, zp), "wb1": b("wb1", zp),
        "ww2": w("ww2", zp, wp), "wb2": b("wb2", wp),
        "cw1": w("cw1", zp, zp), "cb1": b("cb1", zp),
        "cw2": w("cw2", zp, cp), "cb2": b("cb2", cp),
    }
    meta = dict(zdim=zdim, points_dim=points_dim, widths_dim=widths_dim,
                colors_dim=colors_dim, zp=zp, pp=pp, wp=wp, cp=cp,
                matmul_dtype=matmul_dtype)
    return prepped, meta


# --------------------------------------------------------------------------- #
# Forward wrapper
# --------------------------------------------------------------------------- #
def predictor_forward(x, prepped, meta, *, im_size, max_width,
                      tn_cap=1024, out_dtype=jnp.float32):
    B = x.shape[0]
    zp, pp, wp, cp = meta["zp"], meta["pp"], meta["wp"], meta["cp"]
    mdt = meta["matmul_dtype"]
    mdt_size = jnp.dtype(mdt).itemsize
    out_size = jnp.dtype(out_dtype).itemsize

    vmem_cap = _vmem_capacity_bytes()

    # Batch tile: multiple of 16 (bf16 sublane packing); larger on 128-MiB chips.
    tb_cap = 512 if vmem_cap >= (96 << 20) else 256
    tb = min(tb_cap, _round_up(B, 16))
    bp = _round_up(B, tb)
    # Points-head N tile (streams pw2 instead of keeping it VMEM-resident).
    tn = _largest_tile(pp, tn_cap)
    grid = (bp // tb, pp // tn)

    xp = _pad2d(x, bp, zp).astype(mdt)

    half = float(im_size // 2)        # matches torch's `im_size // 2` on a float
    kernel = functools.partial(predictor_kernel, half=half,
                               max_width=float(max_width))

    # --- VMEM budget (residents single-buffered; streamed/per-step tiles x2) ---
    resident_names = ("pw1", "pb1", "ww1", "wb1", "ww2", "wb2",
                      "cw1", "cb1", "cw2", "cb2")
    resident_bytes = sum(int(prepped[n].size) * prepped[n].dtype.itemsize
                         for n in resident_names)
    streamed_bytes = 2 * (zp * tn * mdt_size + tn * 4)        # pw2 + pb2 tiles
    tile_bytes = (2 * tb * zp * mdt_size                      # x tile (dbl buf)
                  + tb * zp * mdt_size                        # hp scratch
                  + 2 * tb * (tn + wp + cp) * out_size)       # output tiles
    vmem_need = resident_bytes + streamed_bytes + tile_bytes + (2 << 20)
    vmem_limit = int(min(max(vmem_need, 16 << 20), vmem_cap - (4 << 20)))

    pw2_bytes = int(prepped["pw2"].size) * prepped["pw2"].dtype.itemsize
    out_bytes = bp * (pp + wp + cp) * out_size
    cost = pl.CostEstimate(
        flops=2 * bp * zp * (3 * zp + pp + wp + cp),
        transcendentals=bp * (pp + wp),
        bytes_accessed=int(xp.size) * xp.dtype.itemsize + resident_bytes
                       + (bp // tb) * pw2_bytes + out_bytes,
    )

    def build(single_buffer_weights):
        def resident(shape):
            if single_buffer_weights:
                return pl.BlockSpec(shape, lambda i, j: (0, 0),
                                    pipeline_mode=pl.Buffered(1))
            return pl.BlockSpec(shape, lambda i, j: (0, 0))

        in_specs = [
            pl.BlockSpec((tb, zp), lambda i, j: (i, 0)),       # x (batch tiled)
            resident((zp, zp)), resident((1, zp)),             # pw1, pb1
            pl.BlockSpec((zp, tn), lambda i, j: (0, j)),       # pw2 (streamed)
            pl.BlockSpec((1, tn), lambda i, j: (0, j)),        # pb2 (streamed)
            resident((zp, zp)), resident((1, zp)),             # ww1, wb1
            resident((zp, wp)), resident((1, wp)),             # ww2, wb2
            resident((zp, zp)), resident((1, zp)),             # cw1, cb1
            resident((zp, cp)), resident((1, cp)),             # cw2, cb2
        ]
        out_specs = (
            pl.BlockSpec((tb, tn), lambda i, j: (i, j)),       # points
            pl.BlockSpec((tb, wp), lambda i, j: (i, 0)),       # widths
            pl.BlockSpec((tb, cp), lambda i, j: (i, 0)),       # colors
        )
        out_shape = (jax.ShapeDtypeStruct((bp, pp), out_dtype),
                     jax.ShapeDtypeStruct((bp, wp), out_dtype),
                     jax.ShapeDtypeStruct((bp, cp), out_dtype))
        return pl.pallas_call(
            kernel,
            out_shape=out_shape,
            grid=grid,
            in_specs=in_specs,
            out_specs=out_specs,
            scratch_shapes=[pltpu.VMEM((tb, zp), mdt)],
            compiler_params=pltpu.CompilerParams(
                dimension_semantics=("parallel", "arbitrary"),
                vmem_limit_bytes=vmem_limit),
            cost_estimate=cost,
        )

    args = (xp, prepped["pw1"], prepped["pb1"], prepped["pw2"], prepped["pb2"],
            prepped["ww1"], prepped["wb1"], prepped["ww2"], prepped["wb2"],
            prepped["cw1"], prepped["cb1"], prepped["cw2"], prepped["cb2"])

    try:
        points, widths, colors = build(single_buffer_weights=True)(*args)
    except Exception:
        # Fallback if single-buffered (pl.Buffered(1)) resident specs are
        # unsupported by this jax version: default double-buffered residents.
        points, widths, colors = build(single_buffer_weights=False)(*args)

    return {"points": points[:B, :meta["points_dim"]],
            "widths": widths[:B, :meta["widths_dim"]],
            "colors": colors[:B, :meta["colors_dim"]]}


# --------------------------------------------------------------------------- #
# Synthetic parameters + pure-JAX reference
# --------------------------------------------------------------------------- #
def init_params(key, zdim, paths, segments):
    """Deterministic synthetic parameters matching the torch module's shapes.

    Matches Predictor._init_param(): the width head's second Linear has
    zero weight and zero bias.
    """
    points_dim = 2 * paths * (segments * 3 + 1)
    colors_dim = paths * 4
    keys = jax.random.split(key, 10)
    s = 0.05
    return {
        # point_predictor
        "pw1": s * jax.random.normal(keys[0], (zdim, zdim), jnp.float32),
        "pb1": s * jax.random.normal(keys[1], (1, zdim), jnp.float32),
        "pw2": s * jax.random.normal(keys[2], (zdim, points_dim), jnp.float32),
        "pb2": s * jax.random.normal(keys[3], (1, points_dim), jnp.float32),
        # width_predictor (second layer zero-initialized, per _init_param)
        "ww1": s * jax.random.normal(keys[4], (zdim, zdim), jnp.float32),
        "wb1": s * jax.random.normal(keys[5], (1, zdim), jnp.float32),
        "ww2": jnp.zeros((zdim, paths), jnp.float32),
        "wb2": jnp.zeros((1, paths), jnp.float32),
        # color_predictor
        "cw1": s * jax.random.normal(keys[6], (zdim, zdim), jnp.float32),
        "cb1": s * jax.random.normal(keys[7], (1, zdim), jnp.float32),
        "cw2": s * jax.random.normal(keys[8], (zdim, colors_dim), jnp.float32),
        "cb2": s * jax.random.normal(keys[9], (1, colors_dim), jnp.float32),
    }


def reference_forward(x, params, *, im_size, max_width, matmul_dtype=jnp.float32):
    """Pure-JAX reference.  `matmul_dtype` mirrors the kernel's operand dtype."""
    half = im_size // 2

    def mm(a, w):
        return jnp.dot(a.astype(matmul_dtype), w.astype(matmul_dtype),
                       preferred_element_type=jnp.float32)

    h = jnp.maximum(mm(x, params["pw1"]) + params["pb1"], 0.0)
    points = jnp.tanh(mm(h, params["pw2"]) + params["pb2"]) * half + half
    h = jnp.maximum(mm(x, params["ww1"]) + params["wb1"], 0.0)
    widths = (max_width - 1.0) * jax.nn.sigmoid(mm(h, params["ww2"]) + params["wb2"]) + 1.0
    h = jnp.maximum(mm(x, params["cw1"]) + params["cb1"], 0.0)
    colors = jnp.clip(mm(h, params["cw2"]) + params["cb2"], 0.0, 1.0)
    return {"points": points, "widths": widths, "colors": colors}


if __name__ == "__main__":
    # Small shapes consistent with the module's forward (scaled-down zdim/paths).
    B, zdim, paths, segments = 2, 32, 8, 2
    max_width, im_size = 2.0, 224.0

    key = jax.random.PRNGKey(0)
    k_x, k_p = jax.random.split(key)
    x = jax.random.normal(k_x, (B, zdim), jnp.float32)
    params = init_params(k_p, zdim, paths, segments)

    # One-time weight padding / bf16 cast (hoisted out of the forward path).
    prepped, meta = prepare_params(params)

    out = predictor_forward(x, prepped, meta, im_size=im_size, max_width=max_width)
    out = jax.block_until_ready(out)

    # Compare against a reference that uses the same bf16-operand / f32-accum
    # matmuls (remaining delta: MXU accumulation order + tanh implementation).
    ref = reference_forward(x, params, im_size=im_size, max_width=max_width,
                            matmul_dtype=jnp.bfloat16)

    tol = {"points": (1e-1, 1e-3), "widths": (1e-2, 1e-3), "colors": (1e-2, 1e-3)}
    for name in ("points", "widths", "colors"):
        assert out[name].shape == ref[name].shape, name
        atol, rtol = tol[name]
        assert jnp.allclose(out[name], ref[name], atol=atol, rtol=rtol), name

    print("KERNEL_OK")
</pallas_src>

<mosaic_0001>
module attributes {stable_mosaic.version = 11 : i64} {
  func.func @predictor_kernel(%arg0: i32, %arg1: i32, %arg2: memref<16x128xbf16, #tpu.memory_space<vmem>>, %arg3: memref<128x128xbf16, #tpu.memory_space<vmem>>, %arg4: memref<1x128xf32, #tpu.memory_space<vmem>>, %arg5: memref<128x128xbf16, #tpu.memory_space<vmem>>, %arg6: memref<1x128xf32, #tpu.memory_space<vmem>>, %arg7: memref<128x128xbf16, #tpu.memory_space<vmem>>, %arg8: memref<1x128xf32, #tpu.memory_space<vmem>>, %arg9: memref<128x128xbf16, #tpu.memory_space<vmem>>, %arg10: memref<1x128xf32, #tpu.memory_space<vmem>>, %arg11: memref<128x128xbf16, #tpu.memory_space<vmem>>, %arg12: memref<1x128xf32, #tpu.memory_space<vmem>>, %arg13: memref<128x128xbf16, #tpu.memory_space<vmem>>, %arg14: memref<1x128xf32, #tpu.memory_space<vmem>>, %arg15: memref<16x128xf32, #tpu.memory_space<vmem>>, %arg16: memref<16x128xf32, #tpu.memory_space<vmem>>, %arg17: memref<16x128xf32, #tpu.memory_space<vmem>>, %arg18: memref<16x128xbf16, #tpu.memory_space<vmem>>) attributes {dimension_semantics = [#tpu.dimension_semantics<parallel>, #tpu.dimension_semantics<arbitrary>], iteration_bounds = array<i64: 1, 1>, scalar_prefetch = 0 : i64, scratch_operands = 1 : i64, tpu.core_type = #tpu.core_type<tc>, window_params = [{transform_indices = @transform_0, window_bounds = array<i64: 16, 128>}, {pipeline_mode = #tpu.pipeline_mode<synchronous>, transform_indices = @transform_1, window_bounds = array<i64: 128, 128>}, {pipeline_mode = #tpu.pipeline_mode<synchronous>, transform_indices = @transform_2, window_bounds = array<i64: 1, 128>}, {transform_indices = @transform_3, window_bounds = array<i64: 128, 128>}, {transform_indices = @transform_4, window_bounds = array<i64: 1, 128>}, {pipeline_mode = #tpu.pipeline_mode<synchronous>, transform_indices = @transform_5, window_bounds = array<i64: 128, 128>}, {pipeline_mode = #tpu.pipeline_mode<synchronous>, transform_indices = @transform_6, window_bounds = array<i64: 1, 128>}, {pipeline_mode = #tpu.pipeline_mode<synchronous>, transform_indices = @transform_7, window_bounds = array<i64: 128, 128>}, {pipeline_mode = #tpu.pipeline_mode<synchronous>, transform_indices = @transform_8, window_bounds = array<i64: 1, 128>}, {pipeline_mode = #tpu.pipeline_mode<synchronous>, transform_indices = @transform_9, window_bounds = array<i64: 128, 128>}, {pipeline_mode = #tpu.pipeline_mode<synchronous>, transform_indices = @transform_10, window_bounds = array<i64: 1, 128>}, {pipeline_mode = #tpu.pipeline_mode<synchronous>, transform_indices = @transform_11, window_bounds = array<i64: 128, 128>}, {pipeline_mode = #tpu.pipeline_mode<synchronous>, transform_indices = @transform_12, window_bounds = array<i64: 1, 128>}, {transform_indices = @transform_13, window_bounds = array<i64: 16, 128>}, {transform_indices = @transform_14, window_bounds = array<i64: 16, 128>}, {transform_indices = @transform_15, window_bounds = array<i64: 16, 128>}]} {
    %c0_i32 = arith.constant 0 : i32
    %0 = arith.cmpi eq, %arg1, %c0_i32 : i32
    %1 = arith.extui %0 : i1 to i32
    %c0_i32_0 = arith.constant 0 : i32
    %2 = arith.cmpi ne, %1, %c0_i32_0 : i32
    scf.if %2 {
      %c0_12 = arith.constant 0 : index
      %c0_13 = arith.constant 0 : index
      %18 = vector.load %arg2[%c0_12, %c0_13] : memref<16x128xbf16, #tpu.memory_space<vmem>>, vector<16x128xbf16>
      %c0_14 = arith.constant 0 : index
      %c0_15 = arith.constant 0 : index
      %19 = vector.load %arg3[%c0_14, %c0_15] : memref<128x128xbf16, #tpu.memory_space<vmem>>, vector<128x128xbf16>
      %cst_16 = arith.constant dense<0.000000e+00> : vector<16x128xf32>
      %20 = tpu.matmul %18, %19, %cst_16 {dimension_numbers = #tpu.dot_dimension_numbers<[1], [0], [0], [1], [0, 0, 1, 1], [], []>} : vector<16x128xbf16>, vector<128x128xbf16>, vector<16x128xf32> -> vector<16x128xf32>
      %c0_17 = arith.constant 0 : index
      %c0_18 = arith.constant 0 : index
      %21 = vector.load %arg4[%c0_17, %c0_18] : memref<1x128xf32, #tpu.memory_space<vmem>>, vector<1x128xf32>
      %22 = vector.broadcast %21 : vector<1x128xf32> to vector<16x128xf32>
      %23 = arith.addf %20, %22 : vector<16x128xf32>
      %cst_19 = arith.constant 0.000000e+00 : f32
      %24 = vector.broadcast %cst_19 : f32 to vector<16x128xf32>
      %25 = arith.maximumf %23, %24 : vector<16x128xf32>
      %26 = arith.truncf %25 : vector<16x128xf32> to vector<16x128xbf16>
      %c0_20 = arith.constant 0 : index
      %c0_21 = arith.constant 0 : index
      %27 = vector.load %arg18[%c0_20, %c0_21] : memref<16x128xbf16, #tpu.memory_space<vmem>>, vector<16x128xbf16>
      tpu.vector_store %arg18[%c0_20, %c0_21], %26 {strides = array<i32>} : memref<16x128xbf16, #tpu.memory_space<vmem>>, vector<16x128xbf16>,
    } else {
    }
    %c0 = arith.constant 0 : index
    %c0_1 = arith.constant 0 : index
    %3 = vector.load %arg18[%c0, %c0_1] : memref<16x128xbf16, #tpu.memory_space<vmem>>, vector<16x128xbf16>
    %c0_2 = arith.constant 0 : index
    %c0_3 = arith.constant 0 : index
    %4 = vector.load %arg5[%c0_2, %c0_3] : memref<128x128xbf16, #tpu.memory_space<vmem>>, vector<128x128xbf16>
    %cst = arith.constant dense<0.000000e+00> : vector<16x128xf32>
    %5 = tpu.matmul %3, %4, %cst {dimension_numbers = #tpu.dot_dimension_numbers<[1], [0], [0], [1], [0, 0, 1, 1], [], []>} : vector<16x128xbf16>, vector<128x128xbf16>, vector<16x128xf32> -> vector<16x128xf32>
    %c0_4 = arith.constant 0 : index
    %c0_5 = arith.constant 0 : index
    %6 = vector.load %arg6[%c0_4, %c0_5] : memref<1x128xf32, #tpu.memory_space<vmem>>, vector<1x128xf32>
    %7 = vector.broadcast %6 : vector<1x128xf32> to vector<16x128xf32>
    %8 = arith.addf %5, %7 : vector<16x128xf32>
    %9 = math.tanh %8 : vector<16x128xf32>
    %cst_6 = arith.constant 1.120000e+02 : f32
    %10 = vector.broadcast %cst_6 : f32 to vector<16x128xf32>
    %11 = arith.mulf %9, %10 : vector<16x128xf32>
    %cst_7 = arith.constant 1.120000e+02 : f32
    %12 = vector.broadcast %cst_7 : f32 to vector<16x128xf32>
    %13 = arith.addf %11, %12 : vector<16x128xf32>
    %c0_8 = arith.constant 0 : index
    %c0_9 = arith.constant 0 : index
    %14 = vector.load %arg15[%c0_8, %c0_9] : memref<16x128xf32, #tpu.memory_space<vmem>>, vector<16x128xf32>
    tpu.vector_store %arg15[%c0_8, %c0_9], %13 {strides = array<i32>} : memref<16x128xf32, #tpu.memory_space<vmem>>, vector<16x128xf32>,
    %c0_i32_10 = arith.constant 0 : i32
    %15 = arith.cmpi eq, %arg1, %c0_i32_10 : i32
    %16 = arith.extui %15 : i1 to i32
    %c0_i32_11 = arith.constant 0 : i32
    %17 = arith.cmpi ne, %16, %c0_i32_11 : i32
    scf.if %17 {
      %c0_12 = arith.constant 0 : index
      %c0_13 = arith.constant 0 : index
      %18 = vector.load %arg2[%c0_12, %c0_13] : memref<16x128xbf16, #tpu.memory_space<vmem>>, vector<16x128xbf16>
      %c0_14 = arith.constant 0 : index
      %c0_15 = arith.constant 0 : index
      %19 = vector.load %arg7[%c0_14, %c0_15] : memref<128x128xbf16, #tpu.memory_space<vmem>>, vector<128x128xbf16>
      %cst_16 = arith.constant dense<0.000000e+00> : vector<16x128xf32>
      %20 = tpu.matmul %18, %19, %cst_16 {dimension_numbers = #tpu.dot_dimension_numbers<[1], [0], [0], [1], [0, 0, 1, 1], [], []>} : vector<16x128xbf16>, vector<128x128xbf16>, vector<16x128xf32> -> vector<16x128xf32>
      %c0_17 = arith.constant 0 : index
      %c0_18 = arith.constant 0 : index
      %21 = vector.load %arg8[%c0_17, %c0_18] : memref<1x128xf32, #tpu.memory_space<vmem>>, vector<1x128xf32>
      %22 = vector.broadcast %21 : vector<1x128xf32> to vector<16x128xf32>
      %23 = arith.addf %20, %22 : vector<16x128xf32>
      %cst_19 = arith.constant 0.000000e+00 : f32
      %24 = vector.broadcast %cst_19 : f32 to vector<16x128xf32>
      %25 = arith.maximumf %23, %24 : vector<16x128xf32>
      %26 = arith.truncf %25 : vector<16x128xf32> to vector<16x128xbf16>
      %c0_20 = arith.constant 0 : index
      %c0_21 = arith.constant 0 : index
      %27 = vector.load %arg9[%c0_20, %c0_21] : memref<128x128xbf16, #tpu.memory_space<vmem>>, vector<128x128xbf16>
      %cst_22 = arith.constant dense<0.000000e+00> : vector<16x128xf32>
      %28 = tpu.matmul %26, %27, %cst_22 {dimension_numbers = #tpu.dot_dimension_numbers<[1], [0], [0], [1], [0, 0, 1, 1], [], []>} : vector<16x128xbf16>, vector<128x128xbf16>, vector<16x128xf32> -> vector<16x128xf32>
      %c0_23 = arith.constant 0 : index
      %c0_24 = arith.constant 0 : index
      %29 = vector.load %arg10[%c0_23, %c0_24] : memref<1x128xf32, #tpu.memory_space<vmem>>, vector<1x128xf32>
      %30 = vector.broadcast %29 : vector<1x128xf32> to vector<16x128xf32>
      %31 = arith.addf %28, %30 : vector<16x128xf32>
      %cst_25 = arith.constant 5.000000e-01 : f32
      %32 = vector.broadcast %cst_25 : f32 to vector<16x128xf32>
      %33 = arith.mulf %32, %31 : vector<16x128xf32>
      %34 = math.tanh %33 : vector<16x128xf32>
      %cst_26 = arith.constant 1.000000e+00 : f32
      %35 = vector.broadcast %cst_26 : f32 to vector<16x128xf32>
      %36 = arith.addf %34, %35 : vector<16x128xf32>
      %cst_27 = arith.constant 5.000000e-01 : f32
      %37 = vector.broadcast %cst_27 : f32 to vector<16x128xf32>
      %38 = arith.mulf %37, %36 : vector<16x128xf32>
      %cst_28 = arith.constant 1.000000e+00 : f32
      %39 = vector.broadcast %cst_28 : f32 to vector<16x128xf32>
      %40 = arith.mulf %39, %38 : vector<16x128xf32>
      %cst_29 = arith.constant 1.000000e+00 : f32
      %41 = vector.broadcast %cst_29 : f32 to vector<16x128xf32>
      %42 = arith.addf %40, %41 : vector<16x128xf32>
      %c0_30 = arith.constant 0 : index
      %c0_31 = arith.constant 0 : index
      %43 = vector.load %arg16[%c0_30, %c0_31] : memref<16x128xf32, #tpu.memory_space<vmem>>, vector<16x128xf32>
      tpu.vector_store %arg16[%c0_30, %c0_31], %42 {strides = array<i32>} : memref<16x128xf32, #tpu.memory_space<vmem>>, vector<16x128xf32>,
      %c0_32 = arith.constant 0 : index
      %c0_33 = arith.constant 0 : index
      %44 = vector.load %arg11[%c0_32, %c0_33] : memref<128x128xbf16, #tpu.memory_space<vmem>>, vector<128x128xbf16>
      %cst_34 = arith.constant dense<0.000000e+00> : vector<16x128xf32>
      %45 = tpu.matmul %18, %44, %cst_34 {dimension_numbers = #tpu.dot_dimension_numbers<[1], [0], [0], [1], [0, 0, 1, 1], [], []>} : vector<16x128xbf16>, vector<128x128xbf16>, vector<16x128xf32> -> vector<16x128xf32>
      %c0_35 = arith.constant 0 : index
      %c0_36 = arith.constant 0 : index
      %46 = vector.load %arg12[%c0_35, %c0_36] : memref<1x128xf32, #tpu.memory_space<vmem>>, vector<1x128xf32>
      %47 = vector.broadcast %46 : vector<1x128xf32> to vector<16x128xf32>
      %48 = arith.addf %45, %47 : vector<16x128xf32>
      %cst_37 = arith.constant 0.000000e+00 : f32
      %49 = vector.broadcast %cst_37 : f32 to vector<16x128xf32>
      %50 = arith.maximumf %48, %49 : vector<16x128xf32>
      %51 = arith.truncf %50 : vector<16x128xf32> to vector<16x128xbf16>
      %c0_38 = arith.constant 0 : index
      %c0_39 = arith.constant 0 : index
      %52 = vector.load %arg13[%c0_38, %c0_39] : memref<128x128xbf16, #tpu.memory_space<vmem>>, vector<128x128xbf16>
      %cst_40 = arith.constant dense<0.000000e+00> : vector<16x128xf32>
      %53 = tpu.matmul %51, %52, %cst_40 {dimension_numbers = #tpu.dot_dimension_numbers<[1], [0], [0], [1], [0, 0, 1, 1], [], []>} : vector<16x128xbf16>, vector<128x128xbf16>, vector<16x128xf32> -> vector<16x128xf32>
      %c0_41 = arith.constant 0 : index
      %c0_42 = arith.constant 0 : index
      %54 = vector.load %arg14[%c0_41, %c0_42] : memref<1x128xf32, #tpu.memory_space<vmem>>, vector<1x128xf32>
      %55 = vector.broadcast %54 : vector<1x128xf32> to vector<16x128xf32>
      %56 = arith.addf %53, %55 : vector<16x128xf32>
      %cst_43 = arith.constant 0.000000e+00 : f32
      %cst_44 = arith.constant 1.000000e+00 : f32
      %57 = vector.broadcast %cst_43 : f32 to vector<16x128xf32>
      %58 = arith.maximumf %57, %56 : vector<16x128xf32>
      %59 = vector.broadcast %cst_44 : f32 to vector<16x128xf32>
      %60 = arith.minimumf %59, %58 : vector<16x128xf32>
      %c0_45 = arith.constant 0 : index
      %c0_46 = arith.constant 0 : index
      %61 = vector.load %arg17[%c0_45, %c0_46] : memref<16x128xf32, #tpu.memory_space<vmem>>, vector<16x128xf32>
      tpu.vector_store %arg17[%c0_45, %c0_46], %60 {strides = array<i32>} : memref<16x128xf32, #tpu.memory_space<vmem>>, vector<16x128xf32>,
    } else {
    }
    return
  }
  func.func @transform_0(%arg0: i32, %arg1: i32) -> (i32, i32) {
    %c0_i32 = arith.constant 0 : i32
    %c0_i32_0 = arith.constant 0 : i32
    return %arg0, %c0_i32 : i32, i32
  }
  func.func @transform_1(%arg0: i32, %arg1: i32) -> (i32, i32) {
    %c0_i32 = arith.constant 0 : i32
    %c0_i32_0 = arith.constant 0 : i32
    %c0_i32_1 = arith.constant 0 : i32
    return %c0_i32, %c0_i32_0 : i32, i32
  }
  func.func @transform_2(%arg0: i32, %arg1: i32) -> (i32, i32) {
    %c0_i32 = arith.constant 0 : i32
    %c0_i32_0 = arith.constant 0 : i32
    %c0_i32_1 = arith.constant 0 : i32
    return %c0_i32, %c0_i32_0 : i32, i32
  }
  func.func @transform_3(%arg0: i32, %arg1: i32) -> (i32, i32) {
    %c0_i32 = arith.constant 0 : i32
    %c0_i32_0 = arith.constant 0 : i32
    return %c0_i32, %arg1 : i32, i32
  }
  func.func @transform_4(%arg0: i32, %arg1: i32) -> (i32, i32) {
    %c0_i32 = arith.constant 0 : i32
    %c0_i32_0 = arith.constant 0 : i32
    return %c0_i32, %arg1 : i32, i32
  }
  func.func @transform_5(%arg0: i32, %arg1: i32) -> (i32, i32) {
    %c0_i32 = arith.constant 0 : i32
    %c0_i32_0 = arith.constant 0 : i32
    %c0_i32_1 = arith.constant 0 : i32
    return %c0_i32, %c0_i32_0 : i32, i32
  }
  func.func @transform_6(%arg0: i32, %arg1: i32) -> (i32, i32) {
    %c0_i32 = arith.constant 0 : i32
    %c0_i32_0 = arith.constant 0 : i32
    %c0_i32_1 = arith.constant 0 : i32
    return %c0_i32, %c0_i32_0 : i32, i32
  }
  func.func @transform_7(%arg0: i32, %arg1: i32) -> (i32, i32) {
    %c0_i32 = arith.constant 0 : i32
    %c0_i32_0 = arith.constant 0 : i32
    %c0_i32_1 = arith.constant 0 : i32
    return %c0_i32, %c0_i32_0 : i32, i32
  }
  func.func @transform_8(%arg0: i32, %arg1: i32) -> (i32, i32) {
    %c0_i32 = arith.constant 0 : i32
    %c0_i32_0 = arith.constant 0 : i32
    %c0_i32_1 = arith.constant 0 : i32
    return %c0_i32, %c0_i32_0 : i32, i32
  }
  func.func @transform_9(%arg0: i32, %arg1: i32) -> (i32, i32) {
    %c0_i32 = arith.constant 0 : i32
    %c0_i32_0 = arith.constant 0 : i32
    %c0_i32_1 = arith.constant 0 : i32
    return %c0_i32, %c0_i32_0 : i32, i32
  }
  func.func @transform_10(%arg0: i32, %arg1: i32) -> (i32, i32) {
    %c0_i32 = arith.constant 0 : i32
    %c0_i32_0 = arith.constant 0 : i32
    %c0_i32_1 = arith.constant 0 : i32
    return %c0_i32, %c0_i32_0 : i32, i32
  }
  func.func @transform_11(%arg0: i32, %arg1: i32) -> (i32, i32) {
    %c0_i32 = arith.constant 0 : i32
    %c0_i32_0 = arith.constant 0 : i32
    %c0_i32_1 = arith.constant 0 : i32
    return %c0_i32, %c0_i32_0 : i32, i32
  }
  func.func @transform_12(%arg0: i32, %arg1: i32) -> (i32, i32) {
    %c0_i32 = arith.constant 0 : i32
    %c0_i32_0 = arith.constant 0 : i32
    %c0_i32_1 = arith.constant 0 : i32
    return %c0_i32, %c0_i32_0 : i32, i32
  }
  func.func @transform_13(%arg0: i32, %arg1: i32) -> (i32, i32) {
    %c0_i32 = arith.constant 0 : i32
    return %arg0, %arg1 : i32, i32
  }
  func.func @transform_14(%arg0: i32, %arg1: i32) -> (i32, i32) {
    %c0_i32 = arith.constant 0 : i32
    %c0_i32_0 = arith.constant 0 : i32
    return %arg0, %c0_i32 : i32, i32
  }
  func.func @transform_15(%arg0: i32, %arg1: i32) -> (i32, i32) {
    %c0_i32 = arith.constant 0 : i32
    %c0_i32_0 = arith.constant 0 : i32
    return %arg0, %c0_i32 : i32, i32
  }
}

module attributes {stable_mosaic.version = 11 : i64} {
  func.func @predictor_kernel(%arg0: i32, %arg1: i32, %arg2: memref<16x128xbf16, #tpu.memory_space<vmem>>, %arg3: memref<128x128xbf16, #tpu.memory_space<vmem>>, %arg4: memref<1x128xf32, #tpu.memory_space<vmem>>, %arg5: memref<128x128xbf16, #tpu.memory_space<vmem>>, %arg6: memref<1x128xf32, #tpu.memory_space<vmem>>, %arg7: memref<128x128xbf16, #tpu.memory_space<vmem>>, %arg8: memref<1x128xf32, #tpu.memory_space<vmem>>, %arg9: memref<128x128xbf16, #tpu.memory_space<vmem>>, %arg10: memref<1x128xf32, #tpu.memory_space<vmem>>, %arg11: memref<128x128xbf16, #tpu.memory_space<vmem>>, %arg12: memref<1x128xf32, #tpu.memory_space<vmem>>, %arg13: memref<128x128xbf16, #tpu.memory_space<vmem>>, %arg14: memref<1x128xf32, #tpu.memory_space<vmem>>, %arg15: memref<16x128xf32, #tpu.memory_space<vmem>>, %arg16: memref<16x128xf32, #tpu.memory_space<vmem>>, %arg17: memref<16x128xf32, #tpu.memory_space<vmem>>, %arg18: memref<16x128xbf16, #tpu.memory_space<vmem>>) attributes {dimension_semantics = [#tpu.dimension_semantics<parallel>, #tpu.dimension_semantics<arbitrary>], iteration_bounds = array<i64: 1, 1>, scalar_prefetch = 0 : i64, scratch_operands = 1 : i64, tpu.core_type = #tpu.core_type<tc>, window_params = [{transform_indices = @transform_0, window_bounds = array<i64: 16, 128>}, {pipeline_mode = #tpu.pipeline_mode<synchronous>, transform_indices = @transform_1, window_bounds = array<i64: 128, 128>}, {pipeline_mode = #tpu.pipeline_mode<synchronous>, transform_indices = @transform_2, window_bounds = array<i64: 1, 128>}, {transform_indices = @transform_3, window_bounds = array<i64: 128, 128>}, {transform_indices = @transform_4, window_bounds = array<i64: 1, 128>}, {pipeline_mode = #tpu.pipeline_mode<synchronous>, transform_indices = @transform_5, window_bounds = array<i64: 128, 128>}, {pipeline_mode = #tpu.pipeline_mode<synchronous>, transform_indices = @transform_6, window_bounds = array<i64: 1, 128>}, {pipeline_mode = #tpu.pipeline_mode<synchronous>, transform_indices = @transform_7, window_bounds = array<i64: 128, 128>}, {pipeline_mode = #tpu.pipeline_mode<synchronous>, transform_indices = @transform_8, window_bounds = array<i64: 1, 128>}, {pipeline_mode = #tpu.pipeline_mode<synchronous>, transform_indices = @transform_9, window_bounds = array<i64: 128, 128>}, {pipeline_mode = #tpu.pipeline_mode<synchronous>, transform_indices = @transform_10, window_bounds = array<i64: 1, 128>}, {pipeline_mode = #tpu.pipeline_mode<synchronous>, transform_indices = @transform_11, window_bounds = array<i64: 128, 128>}, {pipeline_mode = #tpu.pipeline_mode<synchronous>, transform_indices = @transform_12, window_bounds = array<i64: 1, 128>}, {transform_indices = @transform_13, window_bounds = array<i64: 16, 128>}, {transform_indices = @transform_14, window_bounds = array<i64: 16, 128>}, {transform_indices = @transform_15, window_bounds = array<i64: 16, 128>}]} {
    %c0_i32 = arith.constant 0 : i32
    %0 = arith.cmpi eq, %arg1, %c0_i32 : i32
    %1 = arith.extui %0 : i1 to i32
    %c0_i32_0 = arith.constant 0 : i32
    %2 = arith.cmpi ne, %1, %c0_i32_0 : i32
    scf.if %2 {
      %c0_12 = arith.constant 0 : index
      %c0_13 = arith.constant 0 : index
      %18 = vector.load %arg2[%c0_12, %c0_13] : memref<16x128xbf16, #tpu.memory_space<vmem>>, vector<16x128xbf16>
      %c0_14 = arith.constant 0 : index
      %c0_15 = arith.constant 0 : index
      %19 = vector.load %arg3[%c0_14, %c0_15] : memref<128x128xbf16, #tpu.memory_space<vmem>>, vector<128x128xbf16>
      %cst_16 = arith.constant dense<0.000000e+00> : vector<16x128xf32>
      %20 = tpu.matmul %18, %19, %cst_16 {dimension_numbers = #tpu.dot_dimension_numbers<[1], [0], [0], [1], [0, 0, 1, 1], [], []>} : vector<16x128xbf16>, vector<128x128xbf16>, vector<16x128xf32> -> vector<16x128xf32>
      %c0_17 = arith.constant 0 : index
      %c0_18 = arith.constant 0 : index
      %21 = vector.load %arg4[%c0_17, %c0_18] : memref<1x128xf32, #tpu.memory_space<vmem>>, vector<1x128xf32>
      %22 = vector.broadcast %21 : vector<1x128xf32> to vector<16x128xf32>
      %23 = arith.addf %20, %22 : vector<16x128xf32>
      %cst_19 = arith.constant 0.000000e+00 : f32
      %24 = vector.broadcast %cst_19 : f32 to vector<16x128xf32>
      %25 = arith.maximumf %23, %24 : vector<16x128xf32>
      %26 = arith.truncf %25 : vector<16x128xf32> to vector<16x128xbf16>
      %c0_20 = arith.constant 0 : index
      %c0_21 = arith.constant 0 : index
      %27 = vector.load %arg18[%c0_20, %c0_21] : memref<16x128xbf16, #tpu.memory_space<vmem>>, vector<16x128xbf16>
      tpu.vector_store %arg18[%c0_20, %c0_21], %26 {strides = array<i32>} : memref<16x128xbf16, #tpu.memory_space<vmem>>, vector<16x128xbf16>,
    } else {
    }
    %c0 = arith.constant 0 : index
    %c0_1 = arith.constant 0 : index
    %3 = vector.load %arg18[%c0, %c0_1] : memref<16x128xbf16, #tpu.memory_space<vmem>>, vector<16x128xbf16>
    %c0_2 = arith.constant 0 : index
    %c0_3 = arith.constant 0 : index
    %4 = vector.load %arg5[%c0_2, %c0_3] : memref<128x128xbf16, #tpu.memory_space<vmem>>, vector<128x128xbf16>
    %cst = arith.constant dense<0.000000e+00> : vector<16x128xf32>
    %5 = tpu.matmul %3, %4, %cst {dimension_numbers = #tpu.dot_dimension_numbers<[1], [0], [0], [1], [0, 0, 1, 1], [], []>} : vector<16x128xbf16>, vector<128x128xbf16>, vector<16x128xf32> -> vector<16x128xf32>
    %c0_4 = arith.constant 0 : index
    %c0_5 = arith.constant 0 : index
    %6 = vector.load %arg6[%c0_4, %c0_5] : memref<1x128xf32, #tpu.memory_space<vmem>>, vector<1x128xf32>
    %7 = vector.broadcast %6 : vector<1x128xf32> to vector<16x128xf32>
    %8 = arith.addf %5, %7 : vector<16x128xf32>
    %9 = math.tanh %8 : vector<16x128xf32>
    %cst_6 = arith.constant 1.120000e+02 : f32
    %10 = vector.broadcast %cst_6 : f32 to vector<16x128xf32>
    %11 = arith.mulf %9, %10 : vector<16x128xf32>
    %cst_7 = arith.constant 1.120000e+02 : f32
    %12 = vector.broadcast %cst_7 : f32 to vector<16x128xf32>
    %13 = arith.addf %11, %12 : vector<16x128xf32>
    %c0_8 = arith.constant 0 : index
    %c0_9 = arith.constant 0 : index
    %14 = vector.load %arg15[%c0_8, %c0_9] : memref<16x128xf32, #tpu.memory_space<vmem>>, vector<16x128xf32>
    tpu.vector_store %arg15[%c0_8, %c0_9], %13 {strides = array<i32>} : memref<16x128xf32, #tpu.memory_space<vmem>>, vector<16x128xf32>,
    %c0_i32_10 = arith.constant 0 : i32
    %15 = arith.cmpi eq, %arg1, %c0_i32_10 : i32
    %16 = arith.extui %15 : i1 to i32
    %c0_i32_11 = arith.constant 0 : i32
    %17 = arith.cmpi ne, %16, %c0_i32_11 : i32
    scf.if %17 {
      %c0_12 = arith.constant 0 : index
      %c0_13 = arith.constant 0 : index
      %18 = vector.load %arg2[%c0_12, %c0_13] : memref<16x128xbf16, #tpu.memory_space<vmem>>, vector<16x128xbf16>
      %c0_14 = arith.constant 0 : index
      %c0_15 = arith.constant 0 : index
      %19 = vector.load %arg7[%c0_14, %c0_15] : memref<128x128xbf16, #tpu.memory_space<vmem>>, vector<128x128xbf16>
      %cst_16 = arith.constant dense<0.000000e+00> : vector<16x128xf32>
      %20 = tpu.matmul %18, %19, %cst_16 {dimension_numbers = #tpu.dot_dimension_numbers<[1], [0], [0], [1], [0, 0, 1, 1], [], []>} : vector<16x128xbf16>, vector<128x128xbf16>, vector<16x128xf32> -> vector<16x128xf32>
      %c0_17 = arith.constant 0 : index
      %c0_18 = arith.constant 0 : index
      %21 = vector.load %arg8[%c0_17, %c0_18] : memref<1x128xf32, #tpu.memory_space<vmem>>, vector<1x128xf32>
      %22 = vector.broadcast %21 : vector<1x128xf32> to vector<16x128xf32>
      %23 = arith.addf %20, %22 : vector<16x128xf32>
      %cst_19 = arith.constant 0.000000e+00 : f32
      %24 = vector.broadcast %cst_19 : f32 to vector<16x128xf32>
      %25 = arith.maximumf %23, %24 : vector<16x128xf32>
      %26 = arith.truncf %25 : vector<16x128xf32> to vector<16x128xbf16>
      %c0_20 = arith.constant 0 : index
      %c0_21 = arith.constant 0 : index
      %27 = vector.load %arg9[%c0_20, %c0_21] : memref<128x128xbf16, #tpu.memory_space<vmem>>, vector<128x128xbf16>
      %cst_22 = arith.constant dense<0.000000e+00> : vector<16x128xf32>
      %28 = tpu.matmul %26, %27, %cst_22 {dimension_numbers = #tpu.dot_dimension_numbers<[1], [0], [0], [1], [0, 0, 1, 1], [], []>} : vector<16x128xbf16>, vector<128x128xbf16>, vector<16x128xf32> -> vector<16x128xf32>
      %c0_23 = arith.constant 0 : index
      %c0_24 = arith.constant 0 : index
      %29 = vector.load %arg10[%c0_23, %c0_24] : memref<1x128xf32, #tpu.memory_space<vmem>>, vector<1x128xf32>
      %30 = vector.broadcast %29 : vector<1x128xf32> to vector<16x128xf32>
      %31 = arith.addf %28, %30 : vector<16x128xf32>
      %cst_25 = arith.constant 5.000000e-01 : f32
      %32 = vector.broadcast %cst_25 : f32 to vector<16x128xf32>
      %33 = arith.mulf %32, %31 : vector<16x128xf32>
      %34 = math.tanh %33 : vector<16x128xf32>
      %cst_26 = arith.constant 1.000000e+00 : f32
      %35 = vector.broadcast %cst_26 : f32 to vector<16x128xf32>
      %36 = arith.addf %34, %35 : vector<16x128xf32>
      %cst_27 = arith.constant 5.000000e-01 : f32
      %37 = vector.broadcast %cst_27 : f32 to vector<16x128xf32>
      %38 = arith.mulf %37, %36 : vector<16x128xf32>
      %cst_28 = arith.constant 1.000000e+00 : f32
      %39 = vector.broadcast %cst_28 : f32 to vector<16x128xf32>
      %40 = arith.mulf %39, %38 : vector<16x128xf32>
      %cst_29 = arith.constant 1.000000e+00 : f32
      %41 = vector.broadcast %cst_29 : f32 to vector<16x128xf32>
      %42 = arith.addf %40, %41 : vector<16x128xf32>
      %c0_30 = arith.constant 0 : index
      %c0_31 = arith.constant 0 : index
      %43 = vector.load %arg16[%c0_30, %c0_31] : memref<16x128xf32, #tpu.memory_space<vmem>>, vector<16x128xf32>
      tpu.vector_store %arg16[%c0_30, %c0_31], %42 {strides = array<i32>} : memref<16x128xf32, #tpu.memory_space<vmem>>, vector<16x128xf32>,
      %c0_32 = arith.constant 0 : index
      %c0_33 = arith.constant 0 : index
      %44 = vector.load %arg11[%c0_32, %c0_33] : memref<128x128xbf16, #tpu.memory_space<vmem>>, vector<128x128xbf16>
      %cst_34 = arith.constant dense<0.000000e+00> : vector<16x128xf32>
      %45 = tpu.matmul %18, %44, %cst_34 {dimension_numbers = #tpu.dot_dimension_numbers<[1], [0], [0], [1], [0, 0, 1, 1], [], []>} : vector<16x128xbf16>, vector<128x128xbf16>, vector<16x128xf32> -> vector<16x128xf32>
      %c0_35 = arith.constant 0 : index
      %c0_36 = arith.constant 0 : index
      %46 = vector.load %arg12[%c0_35, %c0_36] : memref<1x128xf32, #tpu.memory_space<vmem>>, vector<1x128xf32>
      %47 = vector.broadcast %46 : vector<1x128xf32> to vector<16x128xf32>
      %48 = arith.addf %45, %47 : vector<16x128xf32>
      %cst_37 = arith.constant 0.000000e+00 : f32
      %49 = vector.broadcast %cst_37 : f32 to vector<16x128xf32>
      %50 = arith.maximumf %48, %49 : vector<16x128xf32>
      %51 = arith.truncf %50 : vector<16x128xf32> to vector<16x128xbf16>
      %c0_38 = arith.constant 0 : index
      %c0_39 = arith.constant 0 : index
      %52 = vector.load %arg13[%c0_38, %c0_39] : memref<128x128xbf16, #tpu.memory_space<vmem>>, vector<128x128xbf16>
      %cst_40 = arith.constant dense<0.000000e+00> : vector<16x128xf32>
      %53 = tpu.matmul %51, %52, %cst_40 {dimension_numbers = #tpu.dot_dimension_numbers<[1], [0], [0], [1], [0, 0, 1, 1], [], []>} : vector<16x128xbf16>, vector<128x128xbf16>, vector<16x128xf32> -> vector<16x128xf32>
      %c0_41 = arith.constant 0 : index
      %c0_42 = arith.constant 0 : index
      %54 = vector.load %arg14[%c0_41, %c0_42] : memref<1x128xf32, #tpu.memory_space<vmem>>, vector<1x128xf32>
      %55 = vector.broadcast %54 : vector<1x128xf32> to vector<16x128xf32>
      %56 = arith.addf %53, %55 : vector<16x128xf32>
      %cst_43 = arith.constant 0.000000e+00 : f32
      %cst_44 = arith.constant 1.000000e+00 : f32
      %57 = vector.broadcast %cst_43 : f32 to vector<16x128xf32>
      %58 = arith.maximumf %57, %56 : vector<16x128xf32>
      %59 = vector.broadcast %cst_44 : f32 to vector<16x128xf32>
      %60 = arith.minimumf %59, %58 : vector<16x128xf32>
      %c0_45 = arith.constant 0 : index
      %c0_46 = arith.constant 0 : index
      %61 = vector.load %arg17[%c0_45, %c0_46] : memref<16x128xf32, #tpu.memory_space<vmem>>, vector<16x128xf32>
      tpu.vector_store %arg17[%c0_45, %c0_46], %60 {strides = array<i32>} : memref<16x128xf32, #tpu.memory_space<vmem>>, vector<16x128xf32>,
    } else {
    }
    return
  }
  func.func @transform_0(%arg0: i32, %arg1: i32) -> (i32, i32) {
    %c0_i32 = arith.constant 0 : i32
    %c0_i32_0 = arith.constant 0 : i32
    return %arg0, %c0_i32 : i32, i32
  }
  func.func @transform_1(%arg0: i32, %arg1: i32) -> (i32, i32) {
    %c0_i32 = arith.constant 0 : i32
    %c0_i32_0 = arith.constant 0 : i32
    %c0_i32_1 = arith.constant 0 : i32
    return %c0_i32, %c0_i32_0 : i32, i32
  }
  func.func @transform_2(%arg0: i32, %arg1: i32) -> (i32, i32) {
    %c0_i32 = arith.constant 0 : i32
    %c0_i32_0 = arith.constant 0 : i32
    %c0_i32_1 = arith.constant 0 : i32
    return %c0_i32, %c0_i32_0 : i32, i32
  }
  func.func @transform_3(%arg0: i32, %arg1: i32) -> (i32, i32) {
    %c0_i32 = arith.constant 0 : i32
    %c0_i32_0 = arith.constant 0 : i32
    return %c0_i32, %arg1 : i32, i32
  }
  func.func @transform_4(%arg0: i32, %arg1: i32) -> (i32, i32) {
    %c0_i32 = arith.constant 0 : i32
    %c0_i32_0 = arith.constant 0 : i32
    return %c0_i32, %arg1 : i32, i32
  }
  func.func @transform_5(%arg0: i32, %arg1: i32) -> (i32, i32) {
    %c0_i32 = arith.constant 0 : i32
    %c0_i32_0 = arith.constant 0 : i32
    %c0_i32_1 = arith.constant 0 : i32
    return %c0_i32, %c0_i32_0 : i32, i32
  }
  func.func @transform_6(%arg0: i32, %arg1: i32) -> (i32, i32) {
    %c0_i32 = arith.constant 0 : i32
    %c0_i32_0 = arith.constant 0 : i32
    %c0_i32_1 = arith.constant 0 : i32
    return %c0_i32, %c0_i32_0 : i32, i32
  }
  func.func @transform_7(%arg0: i32, %arg1: i32) -> (i32, i32) {
    %c0_i32 = arith.constant 0 : i32
    %c0_i32_0 = arith.constant 0 : i32
    %c0_i32_1 = arith.constant 0 : i32
    return %c0_i32, %c0_i32_0 : i32, i32
  }
  func.func @transform_8(%arg0: i32, %arg1: i32) -> (i32, i32) {
    %c0_i32 = arith.constant 0 : i32
    %c0_i32_0 = arith.constant 0 : i32
    %c0_i32_1 = arith.constant 0 : i32
    return %c0_i32, %c0_i32_0 : i32, i32
  }
  func.func @transform_9(%arg0: i32, %arg1: i32) -> (i32, i32) {
    %c0_i32 = arith.constant 0 : i32
    %c0_i32_0 = arith.constant 0 : i32
    %c0_i32_1 = arith.constant 0 : i32
    return %c0_i32, %c0_i32_0 : i32, i32
  }
  func.func @transform_10(%arg0: i32, %arg1: i32) -> (i32, i32) {
    %c0_i32 = arith.constant 0 : i32
    %c0_i32_0 = arith.constant 0 : i32
    %c0_i32_1 = arith.constant 0 : i32
    return %c0_i32, %c0_i32_0 : i32, i32
  }
  func.func @transform_11(%arg0: i32, %arg1: i32) -> (i32, i32) {
    %c0_i32 = arith.constant 0 : i32
    %c0_i32_0 = arith.constant 0 : i32
    %c0_i32_1 = arith.constant 0 : i32
    return %c0_i32, %c0_i32_0 : i32, i32
  }
  func.func @transform_12(%arg0: i32, %arg1: i32) -> (i32, i32) {
    %c0_i32 = arith.constant 0 : i32
    %c0_i32_0 = arith.constant 0 : i32
    %c0_i32_1 = arith.constant 0 : i32
    return %c0_i32, %c0_i32_0 : i32, i32
  }
  func.func @transform_13(%arg0: i32, %arg1: i32) -> (i32, i32) {
    %c0_i32 = arith.constant 0 : i32
    return %arg0, %arg1 : i32, i32
  }
  func.func @transform_14(%arg0: i32, %arg1: i32) -> (i32, i32) {
    %c0_i32 = arith.constant 0 : i32
    %c0_i32_0 = arith.constant 0 : i32
    return %arg0, %c0_i32 : i32, i32
  }
  func.func @transform_15(%arg0: i32, %arg1: i32) -> (i32, i32) {
    %c0_i32 = arith.constant 0 : i32
    %c0_i32_0 = arith.constant 0 : i32
    return %arg0, %c0_i32 : i32, i32
  }
}

</mosaic_0001>

<llo_original>
// kernel: tpu_custom_call.1
$region0: #{tpu_custom_call.1}
  #allocation0 [shape = 'u32[]', space=smem, size = 0x4, offset = 0x4, fixed_abs, tag = 'smem constant byte address 0x4 - core index']
  #allocation1 [shape = 'u32[144,128]{1,0:T(1,128)}', space=vmem, size = 0x12000, scoped, tag = 'internal scratch']
  #allocation2 [shape = 'bf16[16,128]{1,0:T(8,128)(2,1)}', space=vmem, size = 0x1000, scoped, tag = 'scratch operand']
  %s0 = inlined_call_operand.hbm [shape: bf16[16,128], index: 0, kind: input, shape index: {}]
  %s1 = inlined_call_operand.hbm [shape: bf16[128,128], index: 1, kind: input, shape index: {}]
  %s2 = inlined_call_operand.vmem [shape: f32[1,128], index: 2, kind: input, shape index: {}]
  %s3 = inlined_call_operand.hbm [shape: bf16[128,128], index: 3, kind: input, shape index: {}]
  %s4 = inlined_call_operand.vmem [shape: f32[1,128], index: 4, kind: input, shape index: {}]
  %s5 = inlined_call_operand.hbm [shape: bf16[128,128], index: 5, kind: input, shape index: {}]
  %s6 = inlined_call_operand.vmem [shape: f32[1,128], index: 6, kind: input, shape index: {}]
  %s7 = inlined_call_operand.hbm [shape: bf16[128,128], index: 7, kind: input, shape index: {}]
  %s8 = inlined_call_operand.vmem [shape: f32[1,128], index: 8, kind: input, shape index: {}]
  %s9 = inlined_call_operand.hbm [shape: bf16[128,128], index: 9, kind: input, shape index: {}]
  %s10 = inlined_call_operand.vmem [shape: f32[1,128], index: 10, kind: input, shape index: {}]
  %s11 = inlined_call_operand.hbm [shape: bf16[128,128], index: 11, kind: input, shape index: {}]
  %s12 = inlined_call_operand.vmem [shape: f32[1,128], index: 12, kind: input, shape index: {}]
  %s13 = inlined_call_operand.hbm [shape: f32[16,128], index: 13, kind: output, shape index: {0}]
  %s14 = inlined_call_operand.hbm [shape: f32[16,128], index: 14, kind: output, shape index: {1}]
  %s15 = inlined_call_operand.hbm [shape: f32[16,128], index: 15, kind: output, shape index: {2}]
  %16 = xla_tuple %s13, %s14, %s15
  %s17 = sld [smem:[#allocation0]]
  $region114: #{tpu_custom_call.1} parent=0
    _
  %s19 = ssub.s32 1, %s17
  %s20 = scalar_select 0, %s19, %s17
  $region1: #{tpu_custom_call.1} parent=0
    #allocation3 [shape = 'u8[4096]{0}', space=vmem, size = 0x1000, scoped, tag = 'input window, operand 0, single buffered']
    #allocation4 [shape = 's32[1]{0}', space=sflag, size = 0x4, scoped, tag = 'scoped memory for tpu_custom_call.1']
    #allocation5 [shape = 's32[1]{0}', space=sflag, size = 0x4, scoped, tag = 'scoped memory for tpu_custom_call.1']
    #allocation6 [shape = 'u8[32768]{0}', space=vmem, size = 0x8000, scoped, tag = 'input window, operand 1, single buffered']
    #allocation7 [shape = 's32[1]{0}', space=sflag, size = 0x4, scoped, tag = 'scoped memory for tpu_custom_call.1']
    #allocation8 [shape = 'u8[32768]{0}', space=vmem, size = 0x8000, scoped, tag = 'input window, operand 3, single buffered']
    #allocation9 [shape = 'u8[32768]{0}', space=vmem, size = 0x8000, scoped, tag = 'input window, operand 5, single buffered']
    #allocation10 [shape = 's32[1]{0}', space=sflag, size = 0x4, scoped, tag = 'scoped memory for tpu_custom_call.1']
    #allocation11 [shape = 'u8[32768]{0}', space=vmem, size = 0x8000, scoped, tag = 'input window, operand 7, single buffered']
    #allocation12 [shape = 'u8[32768]{0}', space=vmem, size = 0x8000, scoped, tag = 'input window, operand 9, single buffered']
    #allocation13 [shape = 's32[1]{0}', space=sflag, size = 0x4, scoped, tag = 'scoped memory for tpu_custom_call.1']
    #allocation14 [shape = 'u8[32768]{0}', space=vmem, size = 0x8000, scoped, tag = 'input window, operand 11, single buffered']
    #allocation15 [shape = 'u8[8192]{0}', space=vmem, size = 0x2000, scoped, tag = 'output window, operand 0, single buffered']
    #allocation16 [shape = 'u8[8192]{0}', space=vmem, size = 0x2000, scoped, tag = 'output window, operand 1, single buffered']
    #allocation17 [shape = 's32[1]{0}', space=sflag, size = 0x4, scoped, tag = 'scoped memory for tpu_custom_call.1']
    #allocation18 [shape = 'u8[8192]{0}', space=vmem, size = 0x2000, scoped, tag = 'output window, operand 2, single buffered']
    %21 = vsyncpa [#allocation4], 0
    %22 = vsyncpa [#allocation7], 0
    %23 = vsyncpa [#allocation10], 0
    %24 = vsyncpa [#allocation13], 0
    %25 = vsyncpa [#allocation5], 0
    %26 = vsyncpa [#allocation17], 0
    // Predicated region
    $region2: #{tpu_custom_call.1} parent=1 // pred_check
      _
    $region3: #{tpu_custom_call.1} parent=1 // pred_check_branch
      %28 = sbr.rel (0) target = $region5
    $region4: #{tpu_custom_call.1} parent=1 // pred_region
      %s30 = ssub.s32 128, 128
      %31 = vsyncadd [#allocation4], %s30
      %s32 = sshll.u32 [#allocation3], 4
      %s33 = int_to_ptr.vmem [resolvable:$true] %s32
      %38 = dma.hbm_to_vmem [thread:$0]  %s0, 128, %s33, [#allocation4], 64, 64, 4
    $region5: #{tpu_custom_call.1} parent=1 // pred_fallthru
      _
    // Predicated region
    $region6: #{tpu_custom_call.1} parent=1 // pred_check
      _
    $region7: #{tpu_custom_call.1} parent=1 // pred_check_branch
      %40 = sbr.rel (0) target = $region9
    $region8: #{tpu_custom_call.1} parent=1 // pred_region
      %s42 = ssub.s32 1024, 1024
      %43 = vsyncadd [#allocation7], %s42
      %s44 = sshll.u32 [#allocation6], 4
      %s45 = int_to_ptr.vmem [resolvable:$true] %s44
      %50 = dma.hbm_to_vmem [thread:$0]  %s1, 1024, %s45, [#allocation7], 64, 64, 4
    $region9: #{tpu_custom_call.1} parent=1 // pred_fallthru
      _
    // Predicated region
    $region10: #{tpu_custom_call.1} parent=1 // pred_check
      _
    $region11: #{tpu_custom_call.1} parent=1 // pred_check_branch
      %52 = sbr.rel (0) target = $region13
    $region12: #{tpu_custom_call.1} parent=1 // pred_region
      _
    $region13: #{tpu_custom_call.1} parent=1 // pred_fallthru
      _
    // Predicated region
    $region14: #{tpu_custom_call.1} parent=1 // pred_check
      _
    $region15: #{tpu_custom_call.1} parent=1 // pred_check_branch
      %54 = sbr.rel (0) target = $region17
    $region16: #{tpu_custom_call.1} parent=1 // pred_region
      %s56 = ssub.s32 1024, 1024
      %57 = vsyncadd [#allocation7], %s56
      %s58 = sshll.u32 [#allocation8], 4
      %s59 = int_to_ptr.vmem [resolvable:$true] %s58
      %64 = dma.hbm_to_vmem [thread:$0]  %s3, 1024, %s59, [#allocation7], 64, 64, 4
    $region17: #{tpu_custom_call.1} parent=1 // pred_fallthru
      _
    // Predicated region
    $region18: #{tpu_custom_call.1} parent=1 // pred_check
      _
    $region19: #{tpu_custom_call.1} parent=1 // pred_check_branch
      %66 = sbr.rel (0) target = $region21
    $region20: #{tpu_custom_call.1} parent=1 // pred_region
      _
    $region21: #{tpu_custom_call.1} parent=1 // pred_fallthru
      _
    // Predicated region
    $region22: #{tpu_custom_call.1} parent=1 // pred_check
      _
    $region23: #{tpu_custom_call.1} parent=1 // pred_check_branch
      %68 = sbr.rel (0) target = $region25
    $region24: #{tpu_custom_call.1} parent=1 // pred_region
      %s70 = ssub.s32 1024, 1024
      %71 = vsyncadd [#allocation10], %s70
      %s72 = sshll.u32 [#allocation9], 4
      %s73 = int_to_ptr.vmem [resolvable:$true] %s72
      %78 = dma.hbm_to_vmem [thread:$0]  %s5, 1024, %s73, [#allocation10], 64, 64, 4
    $region25: #{tpu_custom_call.1} parent=1 // pred_fallthru
      _
    // Predicated region
    $region26: #{tpu_custom_call.1} parent=1 // pred_check
      _
    $region27: #{tpu_custom_call.1} parent=1 // pred_check_branch
      %80 = sbr.rel (0) target = $region29
    $region28: #{tpu_custom_call.1} parent=1 // pred_region
      _
    $region29: #{tpu_custom_call.1} parent=1 // pred_fallthru
      _
    // Predicated region
    $region30: #{tpu_custom_call.1} parent=1 // pred_check
      _
    $region31: #{tpu_custom_call.1} parent=1 // pred_check_branch
      %82 = sbr.rel (0) target = $region33
    $region32: #{tpu_custom_call.1} parent=1 // pred_region
      %s84 = ssub.s32 1024, 1024
      %85 = vsyncadd [#allocation10], %s84
      %s86 = sshll.u32 [#allocation11], 4
      %s87 = int_to_ptr.vmem [resolvable:$true] %s86
      %92 = dma.hbm_to_vmem [thread:$0]  %s7, 1024, %s87, [#allocation10], 64, 64, 4
    $region33: #{tpu_custom_call.1} parent=1 // pred_fallthru
      _
    // Predicated region
    $region34: #{tpu_custom_call.1} parent=1 // pred_check
      _
    $region35: #{tpu_custom_call.1} parent=1 // pred_check_branch
      %94 = sbr.rel (0) target = $region37
    $region36: #{tpu_custom_call.1} parent=1 // pred_region
      _
    $region37: #{tpu_custom_call.1} parent=1 // pred_fallthru
      _
    // Predicated region
    $region38: #{tpu_custom_call.1} parent=1 // pred_check
      _
    $region39: #{tpu_custom_call.1} parent=1 // pred_check_branch
      %96 = sbr.rel (0) target = $region41
    $region40: #{tpu_custom_call.1} parent=1 // pred_region
      %s98 = ssub.s32 1024, 1024
      %99 = vsyncadd [#allocation13], %s98
      %s100 = sshll.u32 [#allocation12], 4
      %s101 = int_to_ptr.vmem [resolvable:$true] %s100
      %106 = dma.hbm_to_vmem [thread:$0]  %s9, 1024, %s101, [#allocation13], 64, 64, 4
    $region41: #{tpu_custom_call.1} parent=1 // pred_fallthru
      _
    // Predicated region
    $region42: #{tpu_custom_call.1} parent=1 // pred_check
      _
    $region43: #{tpu_custom_call.1} parent=1 // pred_check_branch
      %108 = sbr.rel (0) target = $region45
    $region44: #{tpu_custom_call.1} parent=1 // pred_region
      _
    $region45: #{tpu_custom_call.1} parent=1 // pred_fallthru
      _
    // Predicated region
    $region46: #{tpu_custom_call.1} parent=1 // pred_check
      _
    $region47: #{tpu_custom_call.1} parent=1 // pred_check_branch
      %110 = sbr.rel (0) target = $region49
    $region48: #{tpu_custom_call.1} parent=1 // pred_region
      %s112 = ssub.s32 1024, 1024
      %113 = vsyncadd [#allocation13], %s112
      %s114 = sshll.u32 [#allocation14], 4
      %s115 = int_to_ptr.vmem [resolvable:$true] %s114
      %120 = dma.hbm_to_vmem [thread:$0]  %s11, 1024, %s115, [#allocation13], 64, 64, 4
    $region49: #{tpu_custom_call.1} parent=1 // pred_fallthru
      _
    // Predicated region
    $region50: #{tpu_custom_call.1} parent=1 // pred_check
      _
    $region51: #{tpu_custom_call.1} parent=1 // pred_check_branch
      %122 = sbr.rel (0) target = $region53
    $region52: #{tpu_custom_call.1} parent=1 // pred_region
      _
    $region53: #{tpu_custom_call.1} parent=1 // pred_fallthru
      _
    // Predicated region
    $region54: #{tpu_custom_call.1} parent=1 // pred_check
      _
    $region55: #{tpu_custom_call.1} parent=1 // pred_check_branch
      %124 = sbr.rel (0) target = $region57
    $region56: #{tpu_custom_call.1} parent=1 // pred_region
      %125 = dma.done [#allocation4], 128
    $region57: #{tpu_custom_call.1} parent=1 // pred_fallthru
      _
    // Predicated region
    $region58: #{tpu_custom_call.1} parent=1 // pred_check
      _
    $region59: #{tpu_custom_call.1} parent=1 // pred_check_branch
      %127 = sbr.rel (0) target = $region61
    $region60: #{tpu_custom_call.1} parent=1 // pred_region
      %128 = dma.done [#allocation7], 1024
    $region61: #{tpu_custom_call.1} parent=1 // pred_fallthru
      _
    // Predicated region
    $region62: #{tpu_custom_call.1} parent=1 // pred_check
      _
    $region63: #{tpu_custom_call.1} parent=1 // pred_check_branch
      %130 = sbr.rel (0) target = $region65
    $region64: #{tpu_custom_call.1} parent=1 // pred_region
      %131 = dma.done [#allocation7], 1024
    $region65: #{tpu_custom_call.1} parent=1 // pred_fallthru
      _
    // Predicated region
    $region66: #{tpu_custom_call.1} parent=1 // pred_check
      _
    $region67: #{tpu_custom_call.1} parent=1 // pred_check_branch
      %133 = sbr.rel (0) target = $region69
    $region68: #{tpu_custom_call.1} parent=1 // pred_region
      %134 = dma.done [#allocation10], 1024
    $region69: #{tpu_custom_call.1} parent=1 // pred_fallthru
      _
    // Predicated region
    $region70: #{tpu_custom_call.1} parent=1 // pred_check
      _
    $region71: #{tpu_custom_call.1} parent=1 // pred_check_branch
      %136 = sbr.rel (0) target = $region73
    $region72: #{tpu_custom_call.1} parent=1 // pred_region
      %137 = dma.done [#allocation10], 1024
    $region73: #{tpu_custom_call.1} parent=1 // pred_fallthru
      _
    // Predicated region
    $region74: #{tpu_custom_call.1} parent=1 // pred_check
      _
    $region75: #{tpu_custom_call.1} parent=1 // pred_check_branch
      %139 = sbr.rel (0) target = $region77
    $region76: #{tpu_custom_call.1} parent=1 // pred_region
      %140 = dma.done [#allocation13], 1024
    $region77: #{tpu_custom_call.1} parent=1 // pred_fallthru
      _
    // Predicated region
    $region78: #{tpu_custom_call.1} parent=1 // pred_check
      _
    $region79: #{tpu_custom_call.1} parent=1 // pred_check_branch
      %142 = sbr.rel (0) target = $region81
    $region80: #{tpu_custom_call.1} parent=1 // pred_region
      %143 = dma.done [#allocation13], 1024
    $region81: #{tpu_custom_call.1} parent=1 // pred_fallthru
      _
    %p145 = scmp.eq.s32.totalorder 0, 0
    // Predicated region
    $region82: #{tpu_custom_call.1} parent=1 // pred_check
      %p146 = pneg %p145
    $region83: #{tpu_custom_call.1} parent=1 // pred_check_branch
      %148 = sbr.rel (%p146) target = $region85
    $region84: #{tpu_custom_call.1} parent=1 // pred_region
      %v149 = vld [vmem:[#allocation3] sm:$0xf]
      %v150 = vld [vmem:[#allocation3 + $0x4] sm:$0xf]
      %v151 = vld [vmem:[#allocation6] sm:$0xf]
      %v152 = vld [vmem:[#allocation6 + $0x4] sm:$0xf]
      %v153 = vld [vmem:[#allocation6 + $0x8] sm:$0xf]
      %v154 = vld [vmem:[#allocation6 + $0xc] sm:$0xf]
      %v155 = vld [vmem:[#allocation6 + $0x10] sm:$0xf]
      %v156 = vld [vmem:[#allocation6 + $0x14] sm:$0xf]
      %v157 = vld [vmem:[#allocation6 + $0x18] sm:$0xf]
      %v158 = vld [vmem:[#allocation6 + $0x1c] sm:$0xf]
      %v159 = vld [vmem:[#allocation6 + $0x20] sm:$0xf]
      %v160 = vld [vmem:[#allocation6 + $0x24] sm:$0xf]
      %v161 = vld [vmem:[#allocation6 + $0x28] sm:$0xf]
      %v162 = vld [vmem:[#allocation6 + $0x2c] sm:$0xf]
      %v163 = vld [vmem:[#allocation6 + $0x30] sm:$0xf]
      %v164 = vld [vmem:[#allocation6 + $0x34] sm:$0xf]
      %v165 = vld [vmem:[#allocation6 + $0x38] sm:$0xf]
      %v166 = vld [vmem:[#allocation6 + $0x3c] sm:$0xf]
      %v167 = vld [vmem:[%s2] sm:$0x1]
      %v169 = vlaneseq
      %v170 = vshrl.u32 %v169, 7
      %v171 = vsub.s32 0, %v170
      %v172 = vrot.slane %v167, %v171
      %v176 = vunpack.c.l.b16 %v149
      %v177 = vunpack.c.l.b16 %v150
      %v178 = vpack.c.b16 %v177, %v176
      %v196 = vunpack.c.l.b16 %v151
      %v197 = vunpack.c.l.b16 %v152
      %v198 = vunpack.c.l.b16 %v153
      %v199 = vunpack.c.l.b16 %v154
      %v200 = vunpack.c.l.b16 %v155
      %v201 = vunpack.c.l.b16 %v156
      %v202 = vunpack.c.l.b16 %v157
      %v203 = vunpack.c.l.b16 %v158
      %v204 = vunpack.c.l.b16 %v159
      %v205 = vunpack.c.l.b16 %v160
      %v206 = vunpack.c.l.b16 %v161
      %v207 = vunpack.c.l.b16 %v162
      %v208 = vunpack.c.l.b16 %v163
      %v209 = vunpack.c.l.b16 %v164
      %v210 = vunpack.c.l.b16 %v165
      %v211 = vunpack.c.l.b16 %v166
      %v212 = vpack.c.b16 %v197, %v196
      %v213 = vpack.c.b16 %v199, %v198
      %v214 = vpack.c.b16 %v201, %v200
      %v215 = vpack.c.b16 %v203, %v202
      %v216 = vpack.c.b16 %v205, %v204
      %v217 = vpack.c.b16 %v207, %v206
      %v218 = vpack.c.b16 %v209, %v208
      %v219 = vpack.c.b16 %v211, %v210
      %228 = vmatprep.subr.bf16.mxu0 0
      %229 = vmatpush1.bf16.msra.mxu0 %v219
      %230 = vmatprep.subr.bf16.mxu0 0
      %231 = vmatpush1.bf16.msra.mxu0 %v218
      %232 = vmatprep.subr.bf16.mxu0 0
      %233 = vmatpush1.bf16.msra.mxu0 %v217
      %234 = vmatprep.subr.bf16.mxu0 0
      %235 = vmatpush1.bf16.msra.mxu0 %v216
      %236 = vmatprep.subr.bf16.mxu0 0
      %237 = vmatpush1.bf16.msra.mxu0 %v215
      %238 = vmatprep.subr.bf16.mxu0 0
      %239 = vmatpush1.bf16.msra.mxu0 %v214
      %240 = vmatprep.subr.bf16.mxu0 0
      %241 = vmatpush1.bf16.msra.mxu0 %v213
      %242 = vmatprep.subr.bf16.mxu0 0
      %243 = vmatpush1.bf16.msra.mxu0 %v212
      %244 = vmatprep.subr.bf16.mxu0 0
      %245 = vmatpush2.bf16.msra.mxu0 0
      %246 = vmatprep.subr.bf16.mxu0 0
      %247 = vmatpush2.bf16.msra.mxu0 0
      %248 = vmatprep.subr.bf16.mxu0 0
      %249 = vmatpush2.bf16.msra.mxu0 0
      %250 = vmatprep.subr.bf16.mxu0 0
      %251 = vmatpush2.bf16.msra.mxu0 0
      %252 = vmatprep.subr.bf16.mxu0 0
      %253 = vmatpush2.bf16.msra.mxu0 0
      %254 = vmatprep.subr.bf16.mxu0 0
      %255 = vmatpush2.bf16.msra.mxu0 0
      %256 = vmatprep.subr.bf16.mxu0 0
      %257 = vmatpush2.bf16.msra.mxu0 0
      %258 = vmatprep.subr.bf16.mxu0 0
      %259 = vmatpush2.bf16.msra.mxu0 0
      %260 = vmatprep.mubr.bf16.mxu0 0
      %261 = vmatmul.mubr.bf16.gmra.mxu0 %v178
      %v262 = vpop.f32.mrf.mxu0
      %v263 = vadd.f32 %v172, %v262
      %v264 = vpop.f32.mrf.mxu0
      %v265 = vpop.f32.mrf.mxu0
      %v266 = vadd.f32 %v172, %v265
      %v267 = vpop.f32.mrf.mxu0
      %268 = vdwg.mxu0
      %v269 = vmax.f32 %v263, 0.0
      %v270 = vmax.f32 %v266, 0.0
      %v271 = vpack.c.bf16 %v270, %v269
      %v273 = vunpack.c.l.b16 %v271
      %v274 = vunpack.c.h.b16 %v271
      %v275 = vpack.c.b16 %v273, %v273
      %v276 = vpack.c.b16 %v274, %v274
      %279 = vst [vmem:[#allocation2] sm:$0xf] %v275
      %280 = vst [vmem:[#allocation2 + $0x4] sm:$0xf] %v276
    $region85: #{tpu_custom_call.1} parent=1 // pred_fallthru
      _
    %v281 = vld [vmem:[#allocation2] sm:$0xf]
    %v282 = vld [vmem:[#allocation2 + $0x4] sm:$0xf]
    %v283 = vld [vmem:[#allocation8] sm:$0xf]
    %v284 = vld [vmem:[#allocation8 + $0x4] sm:$0xf]
    %v285 = vld [vmem:[#allocation8 + $0x8] sm:$0xf]
    %v286 = vld [vmem:[#allocation8 + $0xc] sm:$0xf]
    %v287 = vld [vmem:[#allocation8 + $0x10] sm:$0xf]
    %v288 = vld [vmem:[#allocation8 + $0x14] sm:$0xf]
    %v289 = vld [vmem:[#allocation8 + $0x18] sm:$0xf]
    %v290 = vld [vmem:[#allocation8 + $0x1c] sm:$0xf]
    %v291 = vld [vmem:[#allocation8 + $0x20] sm:$0xf]
    %v292 = vld [vmem:[#allocation8 + $0x24] sm:$0xf]
    %v293 = vld [vmem:[#allocation8 + $0x28] sm:$0xf]
    %v294 = vld [vmem:[#allocation8 + $0x2c] sm:$0xf]
    %v295 = vld [vmem:[#allocation8 + $0x30] sm:$0xf]
    %v296 = vld [vmem:[#allocation8 + $0x34] sm:$0xf]
    %v297 = vld [vmem:[#allocation8 + $0x38] sm:$0xf]
    %v298 = vld [vmem:[#allocation8 + $0x3c] sm:$0xf]
    %v299 = vld [vmem:[%s4] sm:$0x1]
    %v301 = vlaneseq
    %v302 = vshrl.u32 %v301, 7
    %v303 = vsub.s32 0, %v302
    %v304 = vrot.slane %v299, %v303
    %v308 = vunpack.c.l.b16 %v281
    %v309 = vunpack.c.l.b16 %v282
    %v310 = vpack.c.b16 %v309, %v308
    %v328 = vunpack.c.l.b16 %v283
    %v329 = vunpack.c.l.b16 %v284
    %v330 = vunpack.c.l.b16 %v285
    %v331 = vunpack.c.l.b16 %v286
    %v332 = vunpack.c.l.b16 %v287
    %v333 = vunpack.c.l.b16 %v288
    %v334 = vunpack.c.l.b16 %v289
    %v335 = vunpack.c.l.b16 %v290
    %v336 = vunpack.c.l.b16 %v291
    %v337 = vunpack.c.l.b16 %v292
    %v338 = vunpack.c.l.b16 %v293
    %v339 = vunpack.c.l.b16 %v294
    %v340 = vunpack.c.l.b16 %v295
    %v341 = vunpack.c.l.b16 %v296
    %v342 = vunpack.c.l.b16 %v297
    %v343 = vunpack.c.l.b16 %v298
    %v344 = vpack.c.b16 %v329, %v328
    %v345 = vpack.c.b16 %v331, %v330
    %v346 = vpack.c.b16 %v333, %v332
    %v347 = vpack.c.b16 %v335, %v334
    %v348 = vpack.c.b16 %v337, %v336
    %v349 = vpack.c.b16 %v339, %v338
    %v350 = vpack.c.b16 %v341, %v340
    %v351 = vpack.c.b16 %v343, %v342
    %360 = vmatprep.subr.bf16.mxu0 0
    %361 = vmatpush1.bf16.msra.mxu0 %v351
    %362 = vmatprep.subr.bf16.mxu0 0
    %363 = vmatpush1.bf16.msra.mxu0 %v350
    %364 = vmatprep.subr.bf16.mxu0 0
    %365 = vmatpush1.bf16.msra.mxu0 %v349
    %366 = vmatprep.subr.bf16.mxu0 0
    %367 = vmatpush1.bf16.msra.mxu0 %v348
    %368 = vmatprep.subr.bf16.mxu0 0
    %369 = vmatpush1.bf16.msra.mxu0 %v347
    %370 = vmatprep.subr.bf16.mxu0 0
    %371 = vmatpush1.bf16.msra.mxu0 %v346
    %372 = vmatprep.subr.bf16.mxu0 0
    %373 = vmatpush1.bf16.msra.mxu0 %v345
    %374 = vmatprep.subr.bf16.mxu0 0
    %375 = vmatpush1.bf16.msra.mxu0 %v344
    %376 = vmatprep.subr.bf16.mxu0 0
    %377 = vmatpush2.bf16.msra.mxu0 0
    %378 = vmatprep.subr.bf16.mxu0 0
    %379 = vmatpush2.bf16.msra.mxu0 0
    %380 = vmatprep.subr.bf16.mxu0 0
    %381 = vmatpush2.bf16.msra.mxu0 0
    %382 = vmatprep.subr.bf16.mxu0 0
    %383 = vmatpush2.bf16.msra.mxu0 0
    %384 = vmatprep.subr.bf16.mxu0 0
    %385 = vmatpush2.bf16.msra.mxu0 0
    %386 = vmatprep.subr.bf16.mxu0 0
    %387 = vmatpush2.bf16.msra.mxu0 0
    %388 = vmatprep.subr.bf16.mxu0 0
    %389 = vmatpush2.bf16.msra.mxu0 0
    %390 = vmatprep.subr.bf16.mxu0 0
    %391 = vmatpush2.bf16.msra.mxu0 0
    %392 = vmatprep.mubr.bf16.mxu0 0
    %393 = vmatmul.mubr.bf16.gmra.mxu0 %v310
    %v394 = vpop.f32.mrf.mxu0
    %v395 = vadd.f32 %v304, %v394
    %v396 = vpop.f32.mrf.mxu0
    %v397 = vpop.f32.mrf.mxu0
    %v398 = vadd.f32 %v304, %v397
    %v399 = vpop.f32.mrf.mxu0
    %400 = vdwg.mxu0
    %v401 = vtanh.pop %v395
    %v402 = vtanh.pop %v398
    %v403 = vmul.f32 %v401, 112.0
    %v404 = vmul.f32 %v402, 112.0
    %v405 = vadd.f32 %v403, 112.0
    %v406 = vadd.f32 %v404, 112.0
    %407 = vst [vmem:[#allocation15] sm:$0xff] %v405
    %408 = vst [vmem:[#allocation15 + $0x8] sm:$0xff] %v406
    // Predicated region
    $region86: #{tpu_custom_call.1} parent=1 // pred_check
      %p409 = pneg %p145
    $region87: #{tpu_custom_call.1} parent=1 // pred_check_branch
      %411 = sbr.rel (%p409) target = $region89
    $region88: #{tpu_custom_call.1} parent=1 // pred_region
      %v412 = vld [vmem:[#allocation3] sm:$0xf]
      %v413 = vld [vmem:[#allocation3 + $0x4] sm:$0xf]
      %v414 = vld [vmem:[#allocation9] sm:$0xf]
      %v415 = vld [vmem:[#allocation9 + $0x4] sm:$0xf]
      %v416 = vld [vmem:[#allocation9 + $0x8] sm:$0xf]
      %v417 = vld [vmem:[#allocation9 + $0xc] sm:$0xf]
      %v418 = vld [vmem:[#allocation9 + $0x10] sm:$0xf]
      %v419 = vld [vmem:[#allocation9 + $0x14] sm:$0xf]
      %v420 = vld [vmem:[#allocation9 + $0x18] sm:$0xf]
      %v421 = vld [vmem:[#allocation9 + $0x1c] sm:$0xf]
      %v422 = vld [vmem:[#allocation9 + $0x20] sm:$0xf]
      %v423 = vld [vmem:[#allocation9 + $0x24] sm:$0xf]
      %v424 = vld [vmem:[#allocation9 + $0x28] sm:$0xf]
      %v425 = vld [vmem:[#allocation9 + $0x2c] sm:$0xf]
      %v426 = vld [vmem:[#allocation9 + $0x30] sm:$0xf]
      %v427 = vld [vmem:[#allocation9 + $0x34] sm:$0xf]
      %v428 = vld [vmem:[#allocation9 + $0x38] sm:$0xf]
      %v429 = vld [vmem:[#allocation9 + $0x3c] sm:$0xf]
      %v430 = vld [vmem:[%s6] sm:$0x1]
      %v432 = vlaneseq
      %v433 = vshrl.u32 %v432, 7
      %v434 = vsub.s32 0, %v433
      %v435 = vrot.slane %v430, %v434
      %v439 = vunpack.c.l.b16 %v412
      %v440 = vunpack.c.l.b16 %v413
      %v441 = vpack.c.b16 %v440, %v439
      %v459 = vunpack.c.l.b16 %v414
      %v460 = vunpack.c.l.b16 %v415
      %v461 = vunpack.c.l.b16 %v416
      %v462 = vunpack.c.l.b16 %v417
      %v463 = vunpack.c.l.b16 %v418
      %v464 = vunpack.c.l.b16 %v419
      %v465 = vunpack.c.l.b16 %v420
      %v466 = vunpack.c.l.b16 %v421
      %v467 = vunpack.c.l.b16 %v422
      %v468 = vunpack.c.l.b16 %v423
      %v469 = vunpack.c.l.b16 %v424
      %v470 = vunpack.c.l.b16 %v425
      %v471 = vunpack.c.l.b16 %v426
      %v472 = vunpack.c.l.b16 %v427
      %v473 = vunpack.c.l.b16 %v428
      %v474 = vunpack.c.l.b16 %v429
      %v475 = vpack.c.b16 %v460, %v459
      %v476 = vpack.c.b16 %v462, %v461
      %v477 = vpack.c.b16 %v464, %v463
      %v478 = vpack.c.b16 %v466, %v465
      %v479 = vpack.c.b16 %v468, %v467
      %v480 = vpack.c.b16 %v470, %v469
      %v481 = vpack.c.b16 %v472, %v471
      %v482 = vpack.c.b16 %v474, %v473
      %491 = vmatprep.subr.bf16.mxu0 0
      %492 = vmatpush1.bf16.msra.mxu0 %v482
      %493 = vmatprep.subr.bf16.mxu0 0
      %494 = vmatpush1.bf16.msra.mxu0 %v481
      %495 = vmatprep.subr.bf16.mxu0 0
      %496 = vmatpush1.bf16.msra.mxu0 %v480
      %497 = vmatprep.subr.bf16.mxu0 0
      %498 = vmatpush1.bf16.msra.mxu0 %v479
      %499 = vmatprep.subr.bf16.mxu0 0
      %500 = vmatpush1.bf16.msra.mxu0 %v478
      %501 = vmatprep.subr.bf16.mxu0 0
      %502 = vmatpush1.bf16.msra.mxu0 %v477
      %503 = vmatprep.subr.bf16.mxu0 0
      %504 = vmatpush1.bf16.msra.mxu0 %v476
      %505 = vmatprep.subr.bf16.mxu0 0
      %506 = vmatpush1.bf16.msra.mxu0 %v475
      %507 = vmatprep.subr.bf16.mxu0 0
      %508 = vmatpush2.bf16.msra.mxu0 0
      %509 = vmatprep.subr.bf16.mxu0 0
      %510 = vmatpush2.bf16.msra.mxu0 0
      %511 = vmatprep.subr.bf16.mxu0 0
      %512 = vmatpush2.bf16.msra.mxu0 0
      %513 = vmatprep.subr.bf16.mxu0 0
      %514 = vmatpush2.bf16.msra.mxu0 0
      %515 = vmatprep.subr.bf16.mxu0 0
      %516 = vmatpush2.bf16.msra.mxu0 0
      %517 = vmatprep.subr.bf16.mxu0 0
      %518 = vmatpush2.bf16.msra.mxu0 0
      %519 = vmatprep.subr.bf16.mxu0 0
      %520 = vmatpush2.bf16.msra.mxu0 0
      %521 = vmatprep.subr.bf16.mxu0 0
      %522 = vmatpush2.bf16.msra.mxu0 0
      %523 = vmatprep.mubr.bf16.mxu0 0
      %524 = vmatmul.mubr.bf16.gmra.mxu0 %v441
      %v525 = vpop.f32.mrf.mxu0
      %v526 = vadd.f32 %v435, %v525
      %v527 = vpop.f32.mrf.mxu0
      %v528 = vpop.f32.mrf.mxu0
      %v529 = vadd.f32 %v435, %v528
      %v530 = vpop.f32.mrf.mxu0
      %531 = vdwg.mxu0
      %v532 = vmax.f32 %v526, 0.0
      %v533 = vmax.f32 %v529, 0.0
      %v534 = vpack.c.bf16 %v533, %v532
      %v535 = vld [vmem:[#allocation11] sm:$0xf]
      %v536 = vld [vmem:[#allocation11 + $0x4] sm:$0xf]
      %v537 = vld [vmem:[#allocation11 + $0x8] sm:$0xf]
      %v538 = vld [vmem:[#allocation11 + $0xc] sm:$0xf]
      %v539 = vld [vmem:[#allocation11 + $0x10] sm:$0xf]
      %v540 = vld [vmem:[#allocation11 + $0x14] sm:$0xf]
      %v541 = vld [vmem:[#allocation11 + $0x18] sm:$0xf]
      %v542 = vld [vmem:[#allocation11 + $0x1c] sm:$0xf]
      %v543 = vld [vmem:[#allocation11 + $0x20] sm:$0xf]
      %v544 = vld [vmem:[#allocation11 + $0x24] sm:$0xf]
      %v545 = vld [vmem:[#allocation11 + $0x28] sm:$0xf]
      %v546 = vld [vmem:[#allocation11 + $0x2c] sm:$0xf]
      %v547 = vld [vmem:[#allocation11 + $0x30] sm:$0xf]
      %v548 = vld [vmem:[#allocation11 + $0x34] sm:$0xf]
      %v549 = vld [vmem:[#allocation11 + $0x38] sm:$0xf]
      %v550 = vld [vmem:[#allocation11 + $0x3c] sm:$0xf]
      %v551 = vld [vmem:[%s8] sm:$0x1]
      %v553 = vlaneseq
      %v554 = vshrl.u32 %v553, 7
      %v555 = vsub.s32 0, %v554
      %v556 = vrot.slane %v551, %v555
      %v574 = vunpack.c.l.b16 %v535
      %v575 = vunpack.c.l.b16 %v536
      %v576 = vunpack.c.l.b16 %v537
      %v577 = vunpack.c.l.b16 %v538
      %v578 = vunpack.c.l.b16 %v539
      %v579 = vunpack.c.l.b16 %v540
      %v580 = vunpack.c.l.b16 %v541
      %v581 = vunpack.c.l.b16 %v542
      %v582 = vunpack.c.l.b16 %v543
      %v583 = vunpack.c.l.b16 %v544
      %v584 = vunpack.c.l.b16 %v545
      %v585 = vunpack.c.l.b16 %v546
      %v586 = vunpack.c.l.b16 %v547
      %v587 = vunpack.c.l.b16 %v548
      %v588 = vunpack.c.l.b16 %v549
      %v589 = vunpack.c.l.b16 %v550
      %v590 = vpack.c.b16 %v575, %v574
      %v591 = vpack.c.b16 %v577, %v576
      %v592 = vpack.c.b16 %v579, %v578
      %v593 = vpack.c.b16 %v581, %v580
      %v594 = vpack.c.b16 %v583, %v582
      %v595 = vpack.c.b16 %v585, %v584
      %v596 = vpack.c.b16 %v587, %v586
      %v597 = vpack.c.b16 %v589, %v588
      %606 = vmatprep.subr.bf16.mxu0 0
      %607 = vmatpush1.bf16.msra.mxu0 %v597
      %608 = vmatprep.subr.bf16.mxu0 0
      %609 = vmatpush1.bf16.msra.mxu0 %v596
      %610 = vmatprep.subr.bf16.mxu0 0
      %611 = vmatpush1.bf16.msra.mxu0 %v595
      %612 = vmatprep.subr.bf16.mxu0 0
      %613 = vmatpush1.bf16.msra.mxu0 %v594
      %614 = vmatprep.subr.bf16.mxu0 0
      %615 = vmatpush1.bf16.msra.mxu0 %v593
      %616 = vmatprep.subr.bf16.mxu0 0
      %617 = vmatpush1.bf16.msra.mxu0 %v592
      %618 = vmatprep.subr.bf16.mxu0 0
      %619 = vmatpush1.bf16.msra.mxu0 %v591
      %620 = vmatprep.subr.bf16.mxu0 0
      %621 = vmatpush1.bf16.msra.mxu0 %v590
      %622 = vmatprep.subr.bf16.mxu0 0
      %623 = vmatpush2.bf16.msra.mxu0 0
      %624 = vmatprep.subr.bf16.mxu0 0
      %625 = vmatpush2.bf16.msra.mxu0 0
      %626 = vmatprep.subr.bf16.mxu0 0
      %627 = vmatpush2.bf16.msra.mxu0 0
      %628 = vmatprep.subr.bf16.mxu0 0
      %629 = vmatpush2.bf16.msra.mxu0 0
      %630 = vmatprep.subr.bf16.mxu0 0
      %631 = vmatpush2.bf16.msra.mxu0 0
      %632 = vmatprep.subr.bf16.mxu0 0
      %633 = vmatpush2.bf16.msra.mxu0 0
      %634 = vmatprep.subr.bf16.mxu0 0
      %635 = vmatpush2.bf16.msra.mxu0 0
      %636 = vmatprep.subr.bf16.mxu0 0
      %637 = vmatpush2.bf16.msra.mxu0 0
      %638 = vmatprep.mubr.bf16.mxu0 0
      %639 = vmatmul.mubr.bf16.gmra.mxu0 %v534
      %v640 = vpop.f32.mrf.mxu0
      %v641 = vadd.f32 %v556, %v640
      %v642 = vpop.f32.mrf.mxu0
      %v643 = vpop.f32.mrf.mxu0
      %v644 = vadd.f32 %v556, %v643
      %v645 = vpop.f32.mrf.mxu0
      %646 = vdwg.mxu0
      %v647 = vmul.f32 %v641, 0.5
      %v648 = vmul.f32 %v644, 0.5
      %v649 = vtanh.pop %v647
      %v650 = vtanh.pop %v648
      %v651 = vadd.f32 %v649, 1.0
      %v652 = vadd.f32 %v650, 1.0
      %v653 = vmul.f32 %v651, 0.5
      %v654 = vmul.f32 %v652, 0.5
      %v655 = vadd.f32 %v653, 1.0
      %v656 = vadd.f32 %v654, 1.0
      %657 = vst [vmem:[#allocation16] sm:$0xff] %v655
      %658 = vst [vmem:[#allocation16 + $0x8] sm:$0xff] %v656
      %v659 = vld [vmem:[#allocation12] sm:$0xf]
      %v660 = vld [vmem:[#allocation12 + $0x4] sm:$0xf]
      %v661 = vld [vmem:[#allocation12 + $0x8] sm:$0xf]
      %v662 = vld [vmem:[#allocation12 + $0xc] sm:$0xf]
      %v663 = vld [vmem:[#allocation12 + $0x10] sm:$0xf]
      %v664 = vld [vmem:[#allocation12 + $0x14] sm:$0xf]
      %v665 = vld [vmem:[#allocation12 + $0x18] sm:$0xf]
      %v666 = vld [vmem:[#allocation12 + $0x1c] sm:$0xf]
      %v667 = vld [vmem:[#allocation12 + $0x20] sm:$0xf]
      %v668 = vld [vmem:[#allocation12 + $0x24] sm:$0xf]
      %v669 = vld [vmem:[#allocation12 + $0x28] sm:$0xf]
      %v670 = vld [vmem:[#allocation12 + $0x2c] sm:$0xf]
      %v671 = vld [vmem:[#allocation12 + $0x30] sm:$0xf]
      %v672 = vld [vmem:[#allocation12 + $0x34] sm:$0xf]
      %v673 = vld [vmem:[#allocation12 + $0x38] sm:$0xf]
      %v674 = vld [vmem:[#allocation12 + $0x3c] sm:$0xf]
      %v675 = vld [vmem:[%s10] sm:$0x1]
      %v677 = vlaneseq
      %v678 = vshrl.u32 %v677, 7
      %v679 = vsub.s32 0, %v678
      %v680 = vrot.slane %v675, %v679
      %v698 = vunpack.c.l.b16 %v659
      %v699 = vunpack.c.l.b16 %v660
      %v700 = vunpack.c.l.b16 %v661
      %v701 = vunpack.c.l.b16 %v662
      %v702 = vunpack.c.l.b16 %v663
      %v703 = vunpack.c.l.b16 %v664
      %v704 = vunpack.c.l.b16 %v665
      %v705 = vunpack.c.l.b16 %v666
      %v706 = vunpack.c.l.b16 %v667
      %v707 = vunpack.c.l.b16 %v668
      %v708 = vunpack.c.l.b16 %v669
      %v709 = vunpack.c.l.b16 %v670
      %v710 = vunpack.c.l.b16 %v671
      %v711 = vunpack.c.l.b16 %v672
      %v712 = vunpack.c.l.b16 %v673
      %v713 = vunpack.c.l.b16 %v674
      %v714 = vpack.c.b16 %v699, %v698
      %v715 = vpack.c.b16 %v701, %v700
      %v716 = vpack.c.b16 %v703, %v702
      %v717 = vpack.c.b16 %v705, %v704
      %v718 = vpack.c.b16 %v707, %v706
      %v719 = vpack.c.b16 %v709, %v708
      %v720 = vpack.c.b16 %v711, %v710
      %v721 = vpack.c.b16 %v713, %v712
      %730 = vmatprep.subr.bf16.mxu0 0
      %731 = vmatpush1.bf16.msra.mxu0 %v721
      %732 = vmatprep.subr.bf16.mxu0 0
      %733 = vmatpush1.bf16.msra.mxu0 %v720
      %734 = vmatprep.subr.bf16.mxu0 0
      %735 = vmatpush1.bf16.msra.mxu0 %v719
      %736 = vmatprep.subr.bf16.mxu0 0
      %737 = vmatpush1.bf16.msra.mxu0 %v718
      %738 = vmatprep.subr.bf16.mxu0 0
      %739 = vmatpush1.bf16.msra.mxu0 %v717
      %740 = vmatprep.subr.bf16.mxu0 0
      %741 = vmatpush1.bf16.msra.mxu0 %v716
      %742 = vmatprep.subr.bf16.mxu0 0
      %743 = vmatpush1.bf16.msra.mxu0 %v715
      %744 = vmatprep.subr.bf16.mxu0 0
      %745 = vmatpush1.bf16.msra.mxu0 %v714
      %746 = vmatprep.subr.bf16.mxu0 0
      %747 = vmatpush2.bf16.msra.mxu0 0
      %748 = vmatprep.subr.bf16.mxu0 0
      %749 = vmatpush2.bf16.msra.mxu0 0
      %750 = vmatprep.subr.bf16.mxu0 0
      %751 = vmatpush2.bf16.msra.mxu0 0
      %752 = vmatprep.subr.bf16.mxu0 0
      %753 = vmatpush2.bf16.msra.mxu0 0
      %754 = vmatprep.subr.bf16.mxu0 0
      %755 = vmatpush2.bf16.msra.mxu0 0
      %756 = vmatprep.subr.bf16.mxu0 0
      %757 = vmatpush2.bf16.msra.mxu0 0
      %758 = vmatprep.subr.bf16.mxu0 0
      %759 = vmatpush2.bf16.msra.mxu0 0
      %760 = vmatprep.subr.bf16.mxu0 0
      %761 = vmatpush2.bf16.msra.mxu0 0
      %762 = vmatprep.mubr.bf16.mxu0 0
      %763 = vmatmul.mubr.bf16.gmra.mxu0 %v441
      %v764 = vpop.f32.mrf.mxu0
      %v765 = vadd.f32 %v680, %v764
      %v766 = vpop.f32.mrf.mxu0
      %v767 = vpop.f32.mrf.mxu0
      %v768 = vadd.f32 %v680, %v767
      %v769 = vpop.f32.mrf.mxu0
      %770 = vdwg.mxu0
      %v771 = vmax.f32 %v765, 0.0
      %v772 = vmax.f32 %v768, 0.0
      %v773 = vpack.c.bf16 %v772, %v771
      %v774 = vld [vmem:[#allocation14] sm:$0xf]
      %v775 = vld [vmem:[#allocation14 + $0x4] sm:$0xf]
      %v776 = vld [vmem:[#allocation14 + $0x8] sm:$0xf]
      %v777 = vld [vmem:[#allocation14 + $0xc] sm:$0xf]
      %v778 = vld [vmem:[#allocation14 + $0x10] sm:$0xf]
      %v779 = vld [vmem:[#allocation14 + $0x14] sm:$0xf]
      %v780 = vld [vmem:[#allocation14 + $0x18] sm:$0xf]
      %v781 = vld [vmem:[#allocation14 + $0x1c] sm:$0xf]
      %v782 = vld [vmem:[#allocation14 + $0x20] sm:$0xf]
      %v783 = vld [vmem:[#allocation14 + $0x24] sm:$0xf]
      %v784 = vld [vmem:[#allocation14 + $0x28] sm:$0xf]
      %v785 = vld [vmem:[#allocation14 + $0x2c] sm:$0xf]
      %v786 = vld [vmem:[#allocation14 + $0x30] sm:$0xf]
      %v787 = vld [vmem:[#allocation14 + $0x34] sm:$0xf]
      %v788 = vld [vmem:[#allocation14 + $0x38] sm:$0xf]
      %v789 = vld [vmem:[#allocation14 + $0x3c] sm:$0xf]
      %v790 = vld [vmem:[%s12] sm:$0x1]
      %v792 = vlaneseq
      %v793 = vshrl.u32 %v792, 7
      %v794 = vsub.s32 0, %v793
      %v795 = vrot.slane %v790, %v794
      %v813 = vunpack.c.l.b16 %v774
      %v814 = vunpack.c.l.b16 %v775
      %v815 = vunpack.c.l.b16 %v776
      %v816 = vunpack.c.l.b16 %v777
      %v817 = vunpack.c.l.b16 %v778
      %v818 = vunpack.c.l.b16 %v779
      %v819 = vunpack.c.l.b16 %v780
      %v820 = vunpack.c.l.b16 %v781
      %v821 = vunpack.c.l.b16 %v782
      %v822 = vunpack.c.l.b16 %v783
      %v823 = vunpack.c.l.b16 %v784
      %v824 = vunpack.c.l.b16 %v785
      %v825 = vunpack.c.l.b16 %v786
      %v826 = vunpack.c.l.b16 %v787
      %v827 = vunpack.c.l.b16 %v788
      %v828 = vunpack.c.l.b16 %v789
      %v829 = vpack.c.b16 %v814, %v813
      %v830 = vpack.c.b16 %v816, %v815
      %v831 = vpack.c.b16 %v818, %v817
      %v832 = vpack.c.b16 %v820, %v819
      %v833 = vpack.c.b16 %v822, %v821
      %v834 = vpack.c.b16 %v824, %v823
      %v835 = vpack.c.b16 %v826, %v825
      %v836 = vpack.c.b16 %v828, %v827
      %845 = vmatprep.subr.bf16.mxu0 0
      %846 = vmatpush1.bf16.msra.mxu0 %v836
      %847 = vmatprep.subr.bf16.mxu0 0
      %848 = vmatpush1.bf16.msra.mxu0 %v835
      %849 = vmatprep.subr.bf16.mxu0 0
      %850 = vmatpush1.bf16.msra.mxu0 %v834
      %851 = vmatprep.subr.bf16.mxu0 0
      %852 = vmatpush1.bf16.msra.mxu0 %v833
      %853 = vmatprep.subr.bf16.mxu0 0
      %854 = vmatpush1.bf16.msra.mxu0 %v832
      %855 = vmatprep.subr.bf16.mxu0 0
      %856 = vmatpush1.bf16.msra.mxu0 %v831
      %857 = vmatprep.subr.bf16.mxu0 0
      %858 = vmatpush1.bf16.msra.mxu0 %v830
      %859 = vmatprep.subr.bf16.mxu0 0
      %860 = vmatpush1.bf16.msra.mxu0 %v829
      %861 = vmatprep.subr.bf16.mxu0 0
      %862 = vmatpush2.bf16.msra.mxu0 0
      %863 = vmatprep.subr.bf16.mxu0 0
      %864 = vmatpush2.bf16.msra.mxu0 0
      %865 = vmatprep.subr.bf16.mxu0 0
      %866 = vmatpush2.bf16.msra.mxu0 0
      %867 = vmatprep.subr.bf16.mxu0 0
      %868 = vmatpush2.bf16.msra.mxu0 0
      %869 = vmatprep.subr.bf16.mxu0 0
      %870 = vmatpush2.bf16.msra.mxu0 0
      %871 = vmatprep.subr.bf16.mxu0 0
      %872 = vmatpush2.bf16.msra.mxu0 0
      %873 = vmatprep.subr.bf16.mxu0 0
      %874 = vmatpush2.bf16.msra.mxu0 0
      %875 = vmatprep.subr.bf16.mxu0 0
      %876 = vmatpush2.bf16.msra.mxu0 0
      %877 = vmatprep.mubr.bf16.mxu0 0
      %878 = vmatmul.mubr.bf16.gmra.mxu0 %v773
      %v879 = vpop.f32.mrf.mxu0
      %v880 = vadd.f32 %v795, %v879
      %v881 = vpop.f32.mrf.mxu0
      %v882 = vpop.f32.mrf.mxu0
      %v883 = vadd.f32 %v795, %v882
      %v884 = vpop.f32.mrf.mxu0
      %885 = vdwg.mxu0
      %v886 = vmax.f32 %v880, 0.0
      %v887 = vmax.f32 %v883, 0.0
      %v888 = vmin.f32 %v886, 1.0
      %v889 = vmin.f32 %v887, 1.0
      %890 = vst [vmem:[#allocation18] sm:$0xff] %v888
      %891 = vst [vmem:[#allocation18 + $0x8] sm:$0xff] %v889
    $region89: #{tpu_custom_call.1} parent=1 // pred_fallthru
      _
    // Predicated region
    $region90: #{tpu_custom_call.1} parent=1 // pred_check
      _
    $region91: #{tpu_custom_call.1} parent=1 // pred_check_branch
      %893 = sbr.rel (0) target = $region93
    $region92: #{tpu_custom_call.1} parent=1 // pred_region
      %s895 = ssub.s32 256, 256
      %896 = vsyncadd [#allocation5], %s895
      %s897 = sshll.u32 [#allocation15], 4
      %s898 = int_to_ptr.vmem [resolvable:$true] %s897
      %903 = dma.vmem_to_hbm [thread:$0]  %s898, 256, %s13, [#allocation5], 128, 128, 8
    $region93: #{tpu_custom_call.1} parent=1 // pred_fallthru
      _
    // Predicated region
    $region94: #{tpu_custom_call.1} parent=1 // pred_check
      _
    $region95: #{tpu_custom_call.1} parent=1 // pred_check_branch
      %905 = sbr.rel (0) target = $region97
    $region96: #{tpu_custom_call.1} parent=1 // pred_region
      %s907 = ssub.s32 256, 256
      %908 = vsyncadd [#allocation17], %s907
      %s909 = sshll.u32 [#allocation16], 4
      %s910 = int_to_ptr.vmem [resolvable:$true] %s909
      %915 = dma.vmem_to_hbm [thread:$0]  %s910, 256, %s14, [#allocation17], 128, 128, 8
    $region97: #{tpu_custom_call.1} parent=1 // pred_fallthru
      _
    // Predicated region
    $region98: #{tpu_custom_call.1} parent=1 // pred_check
      _
    $region99: #{tpu_custom_call.1} parent=1 // pred_check_branch
      %917 = sbr.rel (0) target = $region101
    $region100: #{tpu_custom_call.1} parent=1 // pred_region
      %s919 = ssub.s32 256, 256
      %920 = vsyncadd [#allocation17], %s919
      %s921 = sshll.u32 [#allocation18], 4
      %s922 = int_to_ptr.vmem [resolvable:$true] %s921
      %927 = dma.vmem_to_hbm [thread:$0]  %s922, 256, %s15, [#allocation17], 128, 128, 8
    $region101: #{tpu_custom_call.1} parent=1 // pred_fallthru
      _
    // Predicated region
    $region102: #{tpu_custom_call.1} parent=1 // pred_check
      _
    $region103: #{tpu_custom_call.1} parent=1 // pred_check_branch
      %929 = sbr.rel (0) target = $region105
    $region104: #{tpu_custom_call.1} parent=1 // pred_region
      %930 = dma.done [#allocation5], 256
    $region105: #{tpu_custom_call.1} parent=1 // pred_fallthru
      _
    // Predicated region
    $region106: #{tpu_custom_call.1} parent=1 // pred_check
      _
    $region107: #{tpu_custom_call.1} parent=1 // pred_check_branch
      %932 = sbr.rel (0) target = $region109
    $region108: #{tpu_custom_call.1} parent=1 // pred_region
      %933 = dma.done [#allocation17], 256
    $region109: #{tpu_custom_call.1} parent=1 // pred_fallthru
      _
    // Predicated region
    $region110: #{tpu_custom_call.1} parent=1 // pred_check
      _
    $region111: #{tpu_custom_call.1} parent=1 // pred_check_branch
      %935 = sbr.rel (0) target = $region113
    $region112: #{tpu_custom_call.1} parent=1 // pred_region
      %936 = dma.done [#allocation17], 256
    $region113: #{tpu_custom_call.1} parent=1 // pred_fallthru
      _
    %937 = vsyncpa [#allocation4], 1
    %938 = vsyncpa [#allocation7], 1
    %939 = vsyncpa [#allocation10], 1
    %940 = vsyncpa [#allocation13], 1
    %941 = vsyncpa [#allocation5], 1
    %942 = vsyncpa [#allocation17], 1

// kernel: tpu_custom_call.1
$region0: #{tpu_custom_call.1}
  #allocation0 [shape = 'u32[]', space=smem, size = 0x4, offset = 0x4, fixed_abs, tag = 'smem constant byte address 0x4 - core index']
  #allocation1 [shape = 'u32[144,128]{1,0:T(1,128)}', space=vmem, size = 0x12000, scoped, tag = 'internal scratch']
  #allocation2 [shape = 'bf16[16,128]{1,0:T(8,128)(2,1)}', space=vmem, size = 0x1000, scoped, tag = 'scratch operand']
  %s0 = inlined_call_operand.hbm [shape: bf16[16,128], index: 0, kind: input, shape index: {}]
  %s1 = inlined_call_operand.hbm [shape: bf16[128,128], index: 1, kind: input, shape index: {}]
  %s2 = inlined_call_operand.vmem [shape: f32[1,128], index: 2, kind: input, shape index: {}]
  %s3 = inlined_call_operand.hbm [shape: bf16[128,128], index: 3, kind: input, shape index: {}]
  %s4 = inlined_call_operand.vmem [shape: f32[1,128], index: 4, kind: input, shape index: {}]
  %s5 = inlined_call_operand.hbm [shape: bf16[128,128], index: 5, kind: input, shape index: {}]
  %s6 = inlined_call_operand.vmem [shape: f32[1,128], index: 6, kind: input, shape index: {}]
  %s7 = inlined_call_operand.hbm [shape: bf16[128,128], index: 7, kind: input, shape index: {}]
  %s8 = inlined_call_operand.vmem [shape: f32[1,128], index: 8, kind: input, shape index: {}]
  %s9 = inlined_call_operand.hbm [shape: bf16[128,128], index: 9, kind: input, shape index: {}]
  %s10 = inlined_call_operand.vmem [shape: f32[1,128], index: 10, kind: input, shape index: {}]
  %s11 = inlined_call_operand.hbm [shape: bf16[128,128], index: 11, kind: input, shape index: {}]
  %s12 = inlined_call_operand.vmem [shape: f32[1,128], index: 12, kind: input, shape index: {}]
  %s13 = inlined_call_operand.hbm [shape: f32[16,128], index: 13, kind: output, shape index: {0}]
  %s14 = inlined_call_operand.hbm [shape: f32[16,128], index: 14, kind: output, shape index: {1}]
  %s15 = inlined_call_operand.hbm [shape: f32[16,128], index: 15, kind: output, shape index: {2}]
  %16 = xla_tuple %s13, %s14, %s15
  %s17 = sld [smem:[#allocation0]]
  $region114: #{tpu_custom_call.1} parent=0
    _
  %s19 = ssub.s32 1, %s17
  %s20 = scalar_select 0, %s19, %s17
  $region1: #{tpu_custom_call.1} parent=0
    #allocation3 [shape = 'u8[4096]{0}', space=vmem, size = 0x1000, scoped, tag = 'input window, operand 0, single buffered']
    #allocation4 [shape = 's32[1]{0}', space=sflag, size = 0x4, scoped, tag = 'scoped memory for tpu_custom_call.1']
    #allocation5 [shape = 's32[1]{0}', space=sflag, size = 0x4, scoped, tag = 'scoped memory for tpu_custom_call.1']
    #allocation6 [shape = 'u8[32768]{0}', space=vmem, size = 0x8000, scoped, tag = 'input window, operand 1, single buffered']
    #allocation7 [shape = 's32[1]{0}', space=sflag, size = 0x4, scoped, tag = 'scoped memory for tpu_custom_call.1']
    #allocation8 [shape = 'u8[32768]{0}', space=vmem, size = 0x8000, scoped, tag = 'input window, operand 3, single buffered']
    #allocation9 [shape = 'u8[32768]{0}', space=vmem, size = 0x8000, scoped, tag = 'input window, operand 5, single buffered']
    #allocation10 [shape = 's32[1]{0}', space=sflag, size = 0x4, scoped, tag = 'scoped memory for tpu_custom_call.1']
    #allocation11 [shape = 'u8[32768]{0}', space=vmem, size = 0x8000, scoped, tag = 'input window, operand 7, single buffered']
    #allocation12 [shape = 'u8[32768]{0}', space=vmem, size = 0x8000, scoped, tag = 'input window, operand 9, single buffered']
    #allocation13 [shape = 's32[1]{0}', space=sflag, size = 0x4, scoped, tag = 'scoped memory for tpu_custom_call.1']
    #allocation14 [shape = 'u8[32768]{0}', space=vmem, size = 0x8000, scoped, tag = 'input window, operand 11, single buffered']
    #allocation15 [shape = 'u8[8192]{0}', space=vmem, size = 0x2000, scoped, tag = 'output window, operand 0, single buffered']
    #allocation16 [shape = 'u8[8192]{0}', space=vmem, size = 0x2000, scoped, tag = 'output window, operand 1, single buffered']
    #allocation17 [shape = 's32[1]{0}', space=sflag, size = 0x4, scoped, tag = 'scoped memory for tpu_custom_call.1']
    #allocation18 [shape = 'u8[8192]{0}', space=vmem, size = 0x2000, scoped, tag = 'output window, operand 2, single buffered']
    %21 = vsyncpa [#allocation4], 0
    %22 = vsyncpa [#allocation7], 0
    %23 = vsyncpa [#allocation10], 0
    %24 = vsyncpa [#allocation13], 0
    %25 = vsyncpa [#allocation5], 0
    %26 = vsyncpa [#allocation17], 0
    // Predicated region
    $region2: #{tpu_custom_call.1} parent=1 // pred_check
      _
    $region3: #{tpu_custom_call.1} parent=1 // pred_check_branch
      %28 = sbr.rel (0) target = $region5
    $region4: #{tpu_custom_call.1} parent=1 // pred_region
      %s30 = ssub.s32 128, 128
      %31 = vsyncadd [#allocation4], %s30
      %s32 = sshll.u32 [#allocation3], 4
      %s33 = int_to_ptr.vmem [resolvable:$true] %s32
      %38 = dma.hbm_to_vmem [thread:$0]  %s0, 128, %s33, [#allocation4], 64, 64, 4
    $region5: #{tpu_custom_call.1} parent=1 // pred_fallthru
      _
    // Predicated region
    $region6: #{tpu_custom_call.1} parent=1 // pred_check
      _
    $region7: #{tpu_custom_call.1} parent=1 // pred_check_branch
      %40 = sbr.rel (0) target = $region9
    $region8: #{tpu_custom_call.1} parent=1 // pred_region
      %s42 = ssub.s32 1024, 1024
      %43 = vsyncadd [#allocation7], %s42
      %s44 = sshll.u32 [#allocation6], 4
      %s45 = int_to_ptr.vmem [resolvable:$true] %s44
      %50 = dma.hbm_to_vmem [thread:$0]  %s1, 1024, %s45, [#allocation7], 64, 64, 4
    $region9: #{tpu_custom_call.1} parent=1 // pred_fallthru
      _
    // Predicated region
    $region10: #{tpu_custom_call.1} parent=1 // pred_check
      _
    $region11: #{tpu_custom_call.1} parent=1 // pred_check_branch
      %52 = sbr.rel (0) target = $region13
    $region12: #{tpu_custom_call.1} parent=1 // pred_region
      _
    $region13: #{tpu_custom_call.1} parent=1 // pred_fallthru
      _
    // Predicated region
    $region14: #{tpu_custom_call.1} parent=1 // pred_check
      _
    $region15: #{tpu_custom_call.1} parent=1 // pred_check_branch
      %54 = sbr.rel (0) target = $region17
    $region16: #{tpu_custom_call.1} parent=1 // pred_region
      %s56 = ssub.s32 1024, 1024
      %57 = vsyncadd [#allocation7], %s56
      %s58 = sshll.u32 [#allocation8], 4
      %s59 = int_to_ptr.vmem [resolvable:$true] %s58
      %64 = dma.hbm_to_vmem [thread:$0]  %s3, 1024, %s59, [#allocation7], 64, 64, 4
    $region17: #{tpu_custom_call.1} parent=1 // pred_fallthru
      _
    // Predicated region
    $region18: #{tpu_custom_call.1} parent=1 // pred_check
      _
    $region19: #{tpu_custom_call.1} parent=1 // pred_check_branch
      %66 = sbr.rel (0) target = $region21
    $region20: #{tpu_custom_call.1} parent=1 // pred_region
      _
    $region21: #{tpu_custom_call.1} parent=1 // pred_fallthru
      _
    // Predicated region
    $region22: #{tpu_custom_call.1} parent=1 // pred_check
      _
    $region23: #{tpu_custom_call.1} parent=1 // pred_check_branch
      %68 = sbr.rel (0) target = $region25
    $region24: #{tpu_custom_call.1} parent=1 // pred_region
      %s70 = ssub.s32 1024, 1024
      %71 = vsyncadd [#allocation10], %s70
      %s72 = sshll.u32 [#allocation9], 4
      %s73 = int_to_ptr.vmem [resolvable:$true] %s72
      %78 = dma.hbm_to_vmem [thread:$0]  %s5, 1024, %s73, [#allocation10], 64, 64, 4
    $region25: #{tpu_custom_call.1} parent=1 // pred_fallthru
      _
    // Predicated region
    $region26: #{tpu_custom_call.1} parent=1 // pred_check
      _
    $region27: #{tpu_custom_call.1} parent=1 // pred_check_branch
      %80 = sbr.rel (0) target = $region29
    $region28: #{tpu_custom_call.1} parent=1 // pred_region
      _
    $region29: #{tpu_custom_call.1} parent=1 // pred_fallthru
      _
    // Predicated region
    $region30: #{tpu_custom_call.1} parent=1 // pred_check
      _
    $region31: #{tpu_custom_call.1} parent=1 // pred_check_branch
      %82 = sbr.rel (0) target = $region33
    $region32: #{tpu_custom_call.1} parent=1 // pred_region
      %s84 = ssub.s32 1024, 1024
      %85 = vsyncadd [#allocation10], %s84
      %s86 = sshll.u32 [#allocation11], 4
      %s87 = int_to_ptr.vmem [resolvable:$true] %s86
      %92 = dma.hbm_to_vmem [thread:$0]  %s7, 1024, %s87, [#allocation10], 64, 64, 4
    $region33: #{tpu_custom_call.1} parent=1 // pred_fallthru
      _
    // Predicated region
    $region34: #{tpu_custom_call.1} parent=1 // pred_check
      _
    $region35: #{tpu_custom_call.1} parent=1 // pred_check_branch
      %94 = sbr.rel (0) target = $region37
    $region36: #{tpu_custom_call.1} parent=1 // pred_region
      _
    $region37: #{tpu_custom_call.1} parent=1 // pred_fallthru
      _
    // Predicated region
    $region38: #{tpu_custom_call.1} parent=1 // pred_check
      _
    $region39: #{tpu_custom_call.1} parent=1 // pred_check_branch
      %96 = sbr.rel (0) target = $region41
    $region40: #{tpu_custom_call.1} parent=1 // pred_region
      %s98 = ssub.s32 1024, 1024
      %99 = vsyncadd [#allocation13], %s98
      %s100 = sshll.u32 [#allocation12], 4
      %s101 = int_to_ptr.vmem [resolvable:$true] %s100
      %106 = dma.hbm_to_vmem [thread:$0]  %s9, 1024, %s101, [#allocation13], 64, 64, 4
    $region41: #{tpu_custom_call.1} parent=1 // pred_fallthru
      _
    // Predicated region
    $region42: #{tpu_custom_call.1} parent=1 // pred_check
      _
    $region43: #{tpu_custom_call.1} parent=1 // pred_check_branch
      %108 = sbr.rel (0) target = $region45
    $region44: #{tpu_custom_call.1} parent=1 // pred_region
      _
    $region45: #{tpu_custom_call.1} parent=1 // pred_fallthru
      _
    // Predicated region
    $region46: #{tpu_custom_call.1} parent=1 // pred_check
      _
    $region47: #{tpu_custom_call.1} parent=1 // pred_check_branch
      %110 = sbr.rel (0) target = $region49
    $region48: #{tpu_custom_call.1} parent=1 // pred_region
      %s112 = ssub.s32 1024, 1024
      %113 = vsyncadd [#allocation13], %s112
      %s114 = sshll.u32 [#allocation14], 4
      %s115 = int_to_ptr.vmem [resolvable:$true] %s114
      %120 = dma.hbm_to_vmem [thread:$0]  %s11, 1024, %s115, [#allocation13], 64, 64, 4
    $region49: #{tpu_custom_call.1} parent=1 // pred_fallthru
      _
    // Predicated region
    $region50: #{tpu_custom_call.1} parent=1 // pred_check
      _
    $region51: #{tpu_custom_call.1} parent=1 // pred_check_branch
      %122 = sbr.rel (0) target = $region53
    $region52: #{tpu_custom_call.1} parent=1 // pred_region
      _
    $region53: #{tpu_custom_call.1} parent=1 // pred_fallthru
      _
    // Predicated region
    $region54: #{tpu_custom_call.1} parent=1 // pred_check
      _
    $region55: #{tpu_custom_call.1} parent=1 // pred_check_branch
      %124 = sbr.rel (0) target = $region57
    $region56: #{tpu_custom_call.1} parent=1 // pred_region
      %125 = dma.done [#allocation4], 128
    $region57: #{tpu_custom_call.1} parent=1 // pred_fallthru
      _
    // Predicated region
    $region58: #{tpu_custom_call.1} parent=1 // pred_check
      _
    $region59: #{tpu_custom_call.1} parent=1 // pred_check_branch
      %127 = sbr.rel (0) target = $region61
    $region60: #{tpu_custom_call.1} parent=1 // pred_region
      %128 = dma.done [#allocation7], 1024
    $region61: #{tpu_custom_call.1} parent=1 // pred_fallthru
      _
    // Predicated region
    $region62: #{tpu_custom_call.1} parent=1 // pred_check
      _
    $region63: #{tpu_custom_call.1} parent=1 // pred_check_branch
      %130 = sbr.rel (0) target = $region65
    $region64: #{tpu_custom_call.1} parent=1 // pred_region
      %131 = dma.done [#allocation7], 1024
    $region65: #{tpu_custom_call.1} parent=1 // pred_fallthru
      _
    // Predicated region
    $region66: #{tpu_custom_call.1} parent=1 // pred_check
      _
    $region67: #{tpu_custom_call.1} parent=1 // pred_check_branch
      %133 = sbr.rel (0) target = $region69
    $region68: #{tpu_custom_call.1} parent=1 // pred_region
      %134 = dma.done [#allocation10], 1024
    $region69: #{tpu_custom_call.1} parent=1 // pred_fallthru
      _
    // Predicated region
    $region70: #{tpu_custom_call.1} parent=1 // pred_check
      _
    $region71: #{tpu_custom_call.1} parent=1 // pred_check_branch
      %136 = sbr.rel (0) target = $region73
    $region72: #{tpu_custom_call.1} parent=1 // pred_region
      %137 = dma.done [#allocation10], 1024
    $region73: #{tpu_custom_call.1} parent=1 // pred_fallthru
      _
    // Predicated region
    $region74: #{tpu_custom_call.1} parent=1 // pred_check
      _
    $region75: #{tpu_custom_call.1} parent=1 // pred_check_branch
      %139 = sbr.rel (0) target = $region77
    $region76: #{tpu_custom_call.1} parent=1 // pred_region
      %140 = dma.done [#allocation13], 1024
    $region77: #{tpu_custom_call.1} parent=1 // pred_fallthru
      _
    // Predicated region
    $region78: #{tpu_custom_call.1} parent=1 // pred_check
      _
    $region79: #{tpu_custom_call.1} parent=1 // pred_check_branch
      %142 = sbr.rel (0) target = $region81
    $region80: #{tpu_custom_call.1} parent=1 // pred_region
      %143 = dma.done [#allocation13], 1024
    $region81: #{tpu_custom_call.1} parent=1 // pred_fallthru
      _
    %p145 = scmp.eq.s32.totalorder 0, 0
    // Predicated region
    $region82: #{tpu_custom_call.1} parent=1 // pred_check
      %p146 = pneg %p145
    $region83: #{tpu_custom_call.1} parent=1 // pred_check_branch
      %148 = sbr.rel (%p146) target = $region85
    $region84: #{tpu_custom_call.1} parent=1 // pred_region
      %v149 = vld [vmem:[#allocation3] sm:$0xf]
      %v150 = vld [vmem:[#allocation3 + $0x4] sm:$0xf]
      %v151 = vld [vmem:[#allocation6] sm:$0xf]
      %v152 = vld [vmem:[#allocation6 + $0x4] sm:$0xf]
      %v153 = vld [vmem:[#allocation6 + $0x8] sm:$0xf]
      %v154 = vld [vmem:[#allocation6 + $0xc] sm:$0xf]
      %v155 = vld [vmem:[#allocation6 + $0x10] sm:$0xf]
      %v156 = vld [vmem:[#allocation6 + $0x14] sm:$0xf]
      %v157 = vld [vmem:[#allocation6 + $0x18] sm:$0xf]
      %v158 = vld [vmem:[#allocation6 + $0x1c] sm:$0xf]
      %v159 = vld [vmem:[#allocation6 + $0x20] sm:$0xf]
      %v160 = vld [vmem:[#allocation6 + $0x24] sm:$0xf]
      %v161 = vld [vmem:[#allocation6 + $0x28] sm:$0xf]
      %v162 = vld [vmem:[#allocation6 + $0x2c] sm:$0xf]
      %v163 = vld [vmem:[#allocation6 + $0x30] sm:$0xf]
      %v164 = vld [vmem:[#allocation6 + $0x34] sm:$0xf]
      %v165 = vld [vmem:[#allocation6 + $0x38] sm:$0xf]
      %v166 = vld [vmem:[#allocation6 + $0x3c] sm:$0xf]
      %v167 = vld [vmem:[%s2] sm:$0x1]
      %v169 = vlaneseq
      %v170 = vshrl.u32 %v169, 7
      %v171 = vsub.s32 0, %v170
      %v172 = vrot.slane %v167, %v171
      %v176 = vunpack.c.l.b16 %v149
      %v177 = vunpack.c.l.b16 %v150
      %v178 = vpack.c.b16 %v177, %v176
      %v196 = vunpack.c.l.b16 %v151
      %v197 = vunpack.c.l.b16 %v152
      %v198 = vunpack.c.l.b16 %v153
      %v199 = vunpack.c.l.b16 %v154
      %v200 = vunpack.c.l.b16 %v155
      %v201 = vunpack.c.l.b16 %v156
      %v202 = vunpack.c.l.b16 %v157
      %v203 = vunpack.c.l.b16 %v158
      %v204 = vunpack.c.l.b16 %v159
      %v205 = vunpack.c.l.b16 %v160
      %v206 = vunpack.c.l.b16 %v161
      %v207 = vunpack.c.l.b16 %v162
      %v208 = vunpack.c.l.b16 %v163
      %v209 = vunpack.c.l.b16 %v164
      %v210 = vunpack.c.l.b16 %v165
      %v211 = vunpack.c.l.b16 %v166
      %v212 = vpack.c.b16 %v197, %v196
      %v213 = vpack.c.b16 %v199, %v198
      %v214 = vpack.c.b16 %v201, %v200
      %v215 = vpack.c.b16 %v203, %v202
      %v216 = vpack.c.b16 %v205, %v204
      %v217 = vpack.c.b16 %v207, %v206
      %v218 = vpack.c.b16 %v209, %v208
      %v219 = vpack.c.b16 %v211, %v210
      %228 = vmatprep.subr.bf16.mxu0 0
      %229 = vmatpush1.bf16.msra.mxu0 %v219
      %230 = vmatprep.subr.bf16.mxu0 0
      %231 = vmatpush1.bf16.msra.mxu0 %v218
      %232 = vmatprep.subr.bf16.mxu0 0
      %233 = vmatpush1.bf16.msra.mxu0 %v217
      %234 = vmatprep.subr.bf16.mxu0 0
      %235 = vmatpush1.bf16.msra.mxu0 %v216
      %236 = vmatprep.subr.bf16.mxu0 0
      %237 = vmatpush1.bf16.msra.mxu0 %v215
      %238 = vmatprep.subr.bf16.mxu0 0
      %239 = vmatpush1.bf16.msra.mxu0 %v214
      %240 = vmatprep.subr.bf16.mxu0 0
      %241 = vmatpush1.bf16.msra.mxu0 %v213
      %242 = vmatprep.subr.bf16.mxu0 0
      %243 = vmatpush1.bf16.msra.mxu0 %v212
      %244 = vmatprep.subr.bf16.mxu0 0
      %245 = vmatpush2.bf16.msra.mxu0 0
      %246 = vmatprep.subr.bf16.mxu0 0
      %247 = vmatpush2.bf16.msra.mxu0 0
      %248 = vmatprep.subr.bf16.mxu0 0
      %249 = vmatpush2.bf16.msra.mxu0 0
      %250 = vmatprep.subr.bf16.mxu0 0
      %251 = vmatpush2.bf16.msra.mxu0 0
      %252 = vmatprep.subr.bf16.mxu0 0
      %253 = vmatpush2.bf16.msra.mxu0 0
      %254 = vmatprep.subr.bf16.mxu0 0
      %255 = vmatpush2.bf16.msra.mxu0 0
      %256 = vmatprep.subr.bf16.mxu0 0
      %257 = vmatpush2.bf16.msra.mxu0 0
      %258 = vmatprep.subr.bf16.mxu0 0
      %259 = vmatpush2.bf16.msra.mxu0 0
      %260 = vmatprep.mubr.bf16.mxu0 0
      %261 = vmatmul.mubr.bf16.gmra.mxu0 %v178
      %v262 = vpop.f32.mrf.mxu0
      %v263 = vadd.f32 %v172, %v262
      %v264 = vpop.f32.mrf.mxu0
      %v265 = vpop.f32.mrf.mxu0
      %v266 = vadd.f32 %v172, %v265
      %v267 = vpop.f32.mrf.mxu0
      %268 = vdwg.mxu0
      %v269 = vmax.f32 %v263, 0.0
      %v270 = vmax.f32 %v266, 0.0
      %v271 = vpack.c.bf16 %v270, %v269
      %v273 = vunpack.c.l.b16 %v271
      %v274 = vunpack.c.h.b16 %v271
      %v275 = vpack.c.b16 %v273, %v273
      %v276 = vpack.c.b16 %v274, %v274
      %279 = vst [vmem:[#allocation2] sm:$0xf] %v275
      %280 = vst [vmem:[#allocation2 + $0x4] sm:$0xf] %v276
    $region85: #{tpu_custom_call.1} parent=1 // pred_fallthru
      _
    %v281 = vld [vmem:[#allocation2] sm:$0xf]
    %v282 = vld [vmem:[#allocation2 + $0x4] sm:$0xf]
    %v283 = vld [vmem:[#allocation8] sm:$0xf]
    %v284 = vld [vmem:[#allocation8 + $0x4] sm:$0xf]
    %v285 = vld [vmem:[#allocation8 + $0x8] sm:$0xf]
    %v286 = vld [vmem:[#allocation8 + $0xc] sm:$0xf]
    %v287 = vld [vmem:[#allocation8 + $0x10] sm:$0xf]
    %v288 = vld [vmem:[#allocation8 + $0x14] sm:$0xf]
    %v289 = vld [vmem:[#allocation8 + $0x18] sm:$0xf]
    %v290 = vld [vmem:[#allocation8 + $0x1c] sm:$0xf]
    %v291 = vld [vmem:[#allocation8 + $0x20] sm:$0xf]
    %v292 = vld [vmem:[#allocation8 + $0x24] sm:$0xf]
    %v293 = vld [vmem:[#allocation8 + $0x28] sm:$0xf]
    %v294 = vld [vmem:[#allocation8 + $0x2c] sm:$0xf]
    %v295 = vld [vmem:[#allocation8 + $0x30] sm:$0xf]
    %v296 = vld [vmem:[#allocation8 + $0x34] sm:$0xf]
    %v297 = vld [vmem:[#allocation8 + $0x38] sm:$0xf]
    %v298 = vld [vmem:[#allocation8 + $0x3c] sm:$0xf]
    %v299 = vld [vmem:[%s4] sm:$0x1]
    %v301 = vlaneseq
    %v302 = vshrl.u32 %v301, 7
    %v303 = vsub.s32 0, %v302
    %v304 = vrot.slane %v299, %v303
    %v308 = vunpack.c.l.b16 %v281
    %v309 = vunpack.c.l.b16 %v282
    %v310 = vpack.c.b16 %v309, %v308
    %v328 = vunpack.c.l.b16 %v283
    %v329 = vunpack.c.l.b16 %v284
    %v330 = vunpack.c.l.b16 %v285
    %v331 = vunpack.c.l.b16 %v286
    %v332 = vunpack.c.l.b16 %v287
    %v333 = vunpack.c.l.b16 %v288
    %v334 = vunpack.c.l.b16 %v289
    %v335 = vunpack.c.l.b16 %v290
    %v336 = vunpack.c.l.b16 %v291
    %v337 = vunpack.c.l.b16 %v292
    %v338 = vunpack.c.l.b16 %v293
    %v339 = vunpack.c.l.b16 %v294
    %v340 = vunpack.c.l.b16 %v295
    %v341 = vunpack.c.l.b16 %v296
    %v342 = vunpack.c.l.b16 %v297
    %v343 = vunpack.c.l.b16 %v298
    %v344 = vpack.c.b16 %v329, %v328
    %v345 = vpack.c.b16 %v331, %v330
    %v346 = vpack.c.b16 %v333, %v332
    %v347 = vpack.c.b16 %v335, %v334
    %v348 = vpack.c.b16 %v337, %v336
    %v349 = vpack.c.b16 %v339, %v338
    %v350 = vpack.c.b16 %v341, %v340
    %v351 = vpack.c.b16 %v343, %v342
    %360 = vmatprep.subr.bf16.mxu0 0
    %361 = vmatpush1.bf16.msra.mxu0 %v351
    %362 = vmatprep.subr.bf16.mxu0 0
    %363 = vmatpush1.bf16.msra.mxu0 %v350
    %364 = vmatprep.subr.bf16.mxu0 0
    %365 = vmatpush1.bf16.msra.mxu0 %v349
    %366 = vmatprep.subr.bf16.mxu0 0
    %367 = vmatpush1.bf16.msra.mxu0 %v348
    %368 = vmatprep.subr.bf16.mxu0 0
    %369 = vmatpush1.bf16.msra.mxu0 %v347
    %370 = vmatprep.subr.bf16.mxu0 0
    %371 = vmatpush1.bf16.msra.mxu0 %v346
    %372 = vmatprep.subr.bf16.mxu0 0
    %373 = vmatpush1.bf16.msra.mxu0 %v345
    %374 = vmatprep.subr.bf16.mxu0 0
    %375 = vmatpush1.bf16.msra.mxu0 %v344
    %376 = vmatprep.subr.bf16.mxu0 0
    %377 = vmatpush2.bf16.msra.mxu0 0
    %378 = vmatprep.subr.bf16.mxu0 0
    %379 = vmatpush2.bf16.msra.mxu0 0
    %380 = vmatprep.subr.bf16.mxu0 0
    %381 = vmatpush2.bf16.msra.mxu0 0
    %382 = vmatprep.subr.bf16.mxu0 0
    %383 = vmatpush2.bf16.msra.mxu0 0
    %384 = vmatprep.subr.bf16.mxu0 0
    %385 = vmatpush2.bf16.msra.mxu0 0
    %386 = vmatprep.subr.bf16.mxu0 0
    %387 = vmatpush2.bf16.msra.mxu0 0
    %388 = vmatprep.subr.bf16.mxu0 0
    %389 = vmatpush2.bf16.msra.mxu0 0
    %390 = vmatprep.subr.bf16.mxu0 0
    %391 = vmatpush2.bf16.msra.mxu0 0
    %392 = vmatprep.mubr.bf16.mxu0 0
    %393 = vmatmul.mubr.bf16.gmra.mxu0 %v310
    %v394 = vpop.f32.mrf.mxu0
    %v395 = vadd.f32 %v304, %v394
    %v396 = vpop.f32.mrf.mxu0
    %v397 = vpop.f32.mrf.mxu0
    %v398 = vadd.f32 %v304, %v397
    %v399 = vpop.f32.mrf.mxu0
    %400 = vdwg.mxu0
    %v401 = vtanh.pop %v395
    %v402 = vtanh.pop %v398
    %v403 = vmul.f32 %v401, 112.0
    %v404 = vmul.f32 %v402, 112.0
    %v405 = vadd.f32 %v403, 112.0
    %v406 = vadd.f32 %v404, 112.0
    %407 = vst [vmem:[#allocation15] sm:$0xff] %v405
    %408 = vst [vmem:[#allocation15 + $0x8] sm:$0xff] %v406
    // Predicated region
    $region86: #{tpu_custom_call.1} parent=1 // pred_check
      %p409 = pneg %p145
    $region87: #{tpu_custom_call.1} parent=1 // pred_check_branch
      %411 = sbr.rel (%p409) target = $region89
    $region88: #{tpu_custom_call.1} parent=1 // pred_region
      %v412 = vld [vmem:[#allocation3] sm:$0xf]
      %v413 = vld [vmem:[#allocation3 + $0x4] sm:$0xf]
      %v414 = vld [vmem:[#allocation9] sm:$0xf]
      %v415 = vld [vmem:[#allocation9 + $0x4] sm:$0xf]
      %v416 = vld [vmem:[#allocation9 + $0x8] sm:$0xf]
      %v417 = vld [vmem:[#allocation9 + $0xc] sm:$0xf]
      %v418 = vld [vmem:[#allocation9 + $0x10] sm:$0xf]
      %v419 = vld [vmem:[#allocation9 + $0x14] sm:$0xf]
      %v420 = vld [vmem:[#allocation9 + $0x18] sm:$0xf]
      %v421 = vld [vmem:[#allocation9 + $0x1c] sm:$0xf]
      %v422 = vld [vmem:[#allocation9 + $0x20] sm:$0xf]
      %v423 = vld [vmem:[#allocation9 + $0x24] sm:$0xf]
      %v424 = vld [vmem:[#allocation9 + $0x28] sm:$0xf]
      %v425 = vld [vmem:[#allocation9 + $0x2c] sm:$0xf]
      %v426 = vld [vmem:[#allocation9 + $0x30] sm:$0xf]
      %v427 = vld [vmem:[#allocation9 + $0x34] sm:$0xf]
      %v428 = vld [vmem:[#allocation9 + $0x38] sm:$0xf]
      %v429 = vld [vmem:[#allocation9 + $0x3c] sm:$0xf]
      %v430 = vld [vmem:[%s6] sm:$0x1]
      %v432 = vlaneseq
      %v433 = vshrl.u32 %v432, 7
      %v434 = vsub.s32 0, %v433
      %v435 = vrot.slane %v430, %v434
      %v439 = vunpack.c.l.b16 %v412
      %v440 = vunpack.c.l.b16 %v413
      %v441 = vpack.c.b16 %v440, %v439
      %v459 = vunpack.c.l.b16 %v414
      %v460 = vunpack.c.l.b16 %v415
      %v461 = vunpack.c.l.b16 %v416
      %v462 = vunpack.c.l.b16 %v417
      %v463 = vunpack.c.l.b16 %v418
      %v464 = vunpack.c.l.b16 %v419
      %v465 = vunpack.c.l.b16 %v420
      %v466 = vunpack.c.l.b16 %v421
      %v467 = vunpack.c.l.b16 %v422
      %v468 = vunpack.c.l.b16 %v423
      %v469 = vunpack.c.l.b16 %v424
      %v470 = vunpack.c.l.b16 %v425
      %v471 = vunpack.c.l.b16 %v426
      %v472 = vunpack.c.l.b16 %v427
      %v473 = vunpack.c.l.b16 %v428
      %v474 = vunpack.c.l.b16 %v429
      %v475 = vpack.c.b16 %v460, %v459
      %v476 = vpack.c.b16 %v462, %v461
      %v477 = vpack.c.b16 %v464, %v463
      %v478 = vpack.c.b16 %v466, %v465
      %v479 = vpack.c.b16 %v468, %v467
      %v480 = vpack.c.b16 %v470, %v469
      %v481 = vpack.c.b16 %v472, %v471
      %v482 = vpack.c.b16 %v474, %v473
      %491 = vmatprep.subr.bf16.mxu0 0
      %492 = vmatpush1.bf16.msra.mxu0 %v482
      %493 = vmatprep.subr.bf16.mxu0 0
      %494 = vmatpush1.bf16.msra.mxu0 %v481
      %495 = vmatprep.subr.bf16.mxu0 0
      %496 = vmatpush1.bf16.msra.mxu0 %v480
      %497 = vmatprep.subr.bf16.mxu0 0
      %498 = vmatpush1.bf16.msra.mxu0 %v479
      %499 = vmatprep.subr.bf16.mxu0 0
      %500 = vmatpush1.bf16.msra.mxu0 %v478
      %501 = vmatprep.subr.bf16.mxu0 0
      %502 = vmatpush1.bf16.msra.mxu0 %v477
      %503 = vmatprep.subr.bf16.mxu0 0
      %504 = vmatpush1.bf16.msra.mxu0 %v476
      %505 = vmatprep.subr.bf16.mxu0 0
      %506 = vmatpush1.bf16.msra.mxu0 %v475
      %507 = vmatprep.subr.bf16.mxu0 0
      %508 = vmatpush2.bf16.msra.mxu0 0
      %509 = vmatprep.subr.bf16.mxu0 0
      %510 = vmatpush2.bf16.msra.mxu0 0
      %511 = vmatprep.subr.bf16.mxu0 0
      %512 = vmatpush2.bf16.msra.mxu0 0
      %513 = vmatprep.subr.bf16.mxu0 0
      %514 = vmatpush2.bf16.msra.mxu0 0
      %515 = vmatprep.subr.bf16.mxu0 0
      %516 = vmatpush2.bf16.msra.mxu0 0
      %517 = vmatprep.subr.bf16.mxu0 0
      %518 = vmatpush2.bf16.msra.mxu0 0
      %519 = vmatprep.subr.bf16.mxu0 0
      %520 = vmatpush2.bf16.msra.mxu0 0
      %521 = vmatprep.subr.bf16.mxu0 0
      %522 = vmatpush2.bf16.msra.mxu0 0
      %523 = vmatprep.mubr.bf16.mxu0 0
      %524 = vmatmul.mubr.bf16.gmra.mxu0 %v441
      %v525 = vpop.f32.mrf.mxu0
      %v526 = vadd.f32 %v435, %v525
      %v527 = vpop.f32.mrf.mxu0
      %v528 = vpop.f32.mrf.mxu0
      %v529 = vadd.f32 %v435, %v528
      %v530 = vpop.f32.mrf.mxu0
      %531 = vdwg.mxu0
      %v532 = vmax.f32 %v526, 0.0
      %v533 = vmax.f32 %v529, 0.0
      %v534 = vpack.c.bf16 %v533, %v532
      %v535 = vld [vmem:[#allocation11] sm:$0xf]
      %v536 = vld [vmem:[#allocation11 + $0x4] sm:$0xf]
      %v537 = vld [vmem:[#allocation11 + $0x8] sm:$0xf]
      %v538 = vld [vmem:[#allocation11 + $0xc] sm:$0xf]
      %v539 = vld [vmem:[#allocation11 + $0x10] sm:$0xf]
      %v540 = vld [vmem:[#allocation11 + $0x14] sm:$0xf]
      %v541 = vld [vmem:[#allocation11 + $0x18] sm:$0xf]
      %v542 = vld [vmem:[#allocation11 + $0x1c] sm:$0xf]
      %v543 = vld [vmem:[#allocation11 + $0x20] sm:$0xf]
      %v544 = vld [vmem:[#allocation11 + $0x24] sm:$0xf]
      %v545 = vld [vmem:[#allocation11 + $0x28] sm:$0xf]
      %v546 = vld [vmem:[#allocation11 + $0x2c] sm:$0xf]
      %v547 = vld [vmem:[#allocation11 + $0x30] sm:$0xf]
      %v548 = vld [vmem:[#allocation11 + $0x34] sm:$0xf]
      %v549 = vld [vmem:[#allocation11 + $0x38] sm:$0xf]
      %v550 = vld [vmem:[#allocation11 + $0x3c] sm:$0xf]
      %v551 = vld [vmem:[%s8] sm:$0x1]
      %v553 = vlaneseq
      %v554 = vshrl.u32 %v553, 7
      %v555 = vsub.s32 0, %v554
      %v556 = vrot.slane %v551, %v555
      %v574 = vunpack.c.l.b16 %v535
      %v575 = vunpack.c.l.b16 %v536
      %v576 = vunpack.c.l.b16 %v537
      %v577 = vunpack.c.l.b16 %v538
      %v578 = vunpack.c.l.b16 %v539
      %v579 = vunpack.c.l.b16 %v540
      %v580 = vunpack.c.l.b16 %v541
      %v581 = vunpack.c.l.b16 %v542
      %v582 = vunpack.c.l.b16 %v543
      %v583 = vunpack.c.l.b16 %v544
      %v584 = vunpack.c.l.b16 %v545
      %v585 = vunpack.c.l.b16 %v546
      %v586 = vunpack.c.l.b16 %v547
      %v587 = vunpack.c.l.b16 %v548
      %v588 = vunpack.c.l.b16 %v549
      %v589 = vunpack.c.l.b16 %v550
      %v590 = vpack.c.b16 %v575, %v574
      %v591 = vpack.c.b16 %v577, %v576
      %v592 = vpack.c.b16 %v579, %v578
      %v593 = vpack.c.b16 %v581, %v580
      %v594 = vpack.c.b16 %v583, %v582
      %v595 = vpack.c.b16 %v585, %v584
      %v596 = vpack.c.b16 %v587, %v586
      %v597 = vpack.c.b16 %v589, %v588
      %606 = vmatprep.subr.bf16.mxu0 0
      %607 = vmatpush1.bf16.msra.mxu0 %v597
      %608 = vmatprep.subr.bf16.mxu0 0
      %609 = vmatpush1.bf16.msra.mxu0 %v596
      %610 = vmatprep.subr.bf16.mxu0 0
      %611 = vmatpush1.bf16.msra.mxu0 %v595
      %612 = vmatprep.subr.bf16.mxu0 0
      %613 = vmatpush1.bf16.msra.mxu0 %v594
      %614 = vmatprep.subr.bf16.mxu0 0
      %615 = vmatpush1.bf16.msra.mxu0 %v593
      %616 = vmatprep.subr.bf16.mxu0 0
      %617 = vmatpush1.bf16.msra.mxu0 %v592
      %618 = vmatprep.subr.bf16.mxu0 0
      %619 = vmatpush1.bf16.msra.mxu0 %v591
      %620 = vmatprep.subr.bf16.mxu0 0
      %621 = vmatpush1.bf16.msra.mxu0 %v590
      %622 = vmatprep.subr.bf16.mxu0 0
      %623 = vmatpush2.bf16.msra.mxu0 0
      %624 = vmatprep.subr.bf16.mxu0 0
      %625 = vmatpush2.bf16.msra.mxu0 0
      %626 = vmatprep.subr.bf16.mxu0 0
      %627 = vmatpush2.bf16.msra.mxu0 0
      %628 = vmatprep.subr.bf16.mxu0 0
      %629 = vmatpush2.bf16.msra.mxu0 0
      %630 = vmatprep.subr.bf16.mxu0 0
      %631 = vmatpush2.bf16.msra.mxu0 0
      %632 = vmatprep.subr.bf16.mxu0 0
      %633 = vmatpush2.bf16.msra.mxu0 0
      %634 = vmatprep.subr.bf16.mxu0 0
      %635 = vmatpush2.bf16.msra.mxu0 0
      %636 = vmatprep.subr.bf16.mxu0 0
      %637 = vmatpush2.bf16.msra.mxu0 0
      %638 = vmatprep.mubr.bf16.mxu0 0
      %639 = vmatmul.mubr.bf16.gmra.mxu0 %v534
      %v640 = vpop.f32.mrf.mxu0
      %v641 = vadd.f32 %v556, %v640
      %v642 = vpop.f32.mrf.mxu0
      %v643 = vpop.f32.mrf.mxu0
      %v644 = vadd.f32 %v556, %v643
      %v645 = vpop.f32.mrf.mxu0
      %646 = vdwg.mxu0
      %v647 = vmul.f32 %v641, 0.5
      %v648 = vmul.f32 %v644, 0.5
      %v649 = vtanh.pop %v647
      %v650 = vtanh.pop %v648
      %v651 = vadd.f32 %v649, 1.0
      %v652 = vadd.f32 %v650, 1.0
      %v653 = vmul.f32 %v651, 0.5
      %v654 = vmul.f32 %v652, 0.5
      %v655 = vadd.f32 %v653, 1.0
      %v656 = vadd.f32 %v654, 1.0
      %657 = vst [vmem:[#allocation16] sm:$0xff] %v655
      %658 = vst [vmem:[#allocation16 + $0x8] sm:$0xff] %v656
      %v659 = vld [vmem:[#allocation12] sm:$0xf]
      %v660 = vld [vmem:[#allocation12 + $0x4] sm:$0xf]
      %v661 = vld [vmem:[#allocation12 + $0x8] sm:$0xf]
      %v662 = vld [vmem:[#allocation12 + $0xc] sm:$0xf]
      %v663 = vld [vmem:[#allocation12 + $0x10] sm:$0xf]
      %v664 = vld [vmem:[#allocation12 + $0x14] sm:$0xf]
      %v665 = vld [vmem:[#allocation12 + $0x18] sm:$0xf]
      %v666 = vld [vmem:[#allocation12 + $0x1c] sm:$0xf]
      %v667 = vld [vmem:[#allocation12 + $0x20] sm:$0xf]
      %v668 = vld [vmem:[#allocation12 + $0x24] sm:$0xf]
      %v669 = vld [vmem:[#allocation12 + $0x28] sm:$0xf]
      %v670 = vld [vmem:[#allocation12 + $0x2c] sm:$0xf]
      %v671 = vld [vmem:[#allocation12 + $0x30] sm:$0xf]
      %v672 = vld [vmem:[#allocation12 + $0x34] sm:$0xf]
      %v673 = vld [vmem:[#allocation12 + $0x38] sm:$0xf]
      %v674 = vld [vmem:[#allocation12 + $0x3c] sm:$0xf]
      %v675 = vld [vmem:[%s10] sm:$0x1]
      %v677 = vlaneseq
      %v678 = vshrl.u32 %v677, 7
      %v679 = vsub.s32 0, %v678
      %v680 = vrot.slane %v675, %v679
      %v698 = vunpack.c.l.b16 %v659
      %v699 = vunpack.c.l.b16 %v660
      %v700 = vunpack.c.l.b16 %v661
      %v701 = vunpack.c.l.b16 %v662
      %v702 = vunpack.c.l.b16 %v663
      %v703 = vunpack.c.l.b16 %v664
      %v704 = vunpack.c.l.b16 %v665
      %v705 = vunpack.c.l.b16 %v666
      %v706 = vunpack.c.l.b16 %v667
      %v707 = vunpack.c.l.b16 %v668
      %v708 = vunpack.c.l.b16 %v669
      %v709 = vunpack.c.l.b16 %v670
      %v710 = vunpack.c.l.b16 %v671
      %v711 = vunpack.c.l.b16 %v672
      %v712 = vunpack.c.l.b16 %v673
      %v713 = vunpack.c.l.b16 %v674
      %v714 = vpack.c.b16 %v699, %v698
      %v715 = vpack.c.b16 %v701, %v700
      %v716 = vpack.c.b16 %v703, %v702
      %v717 = vpack.c.b16 %v705, %v704
      %v718 = vpack.c.b16 %v707, %v706
      %v719 = vpack.c.b16 %v709, %v708
      %v720 = vpack.c.b16 %v711, %v710
      %v721 = vpack.c.b16 %v713, %v712
      %730 = vmatprep.subr.bf16.mxu0 0
      %731 = vmatpush1.bf16.msra.mxu0 %v721
      %732 = vmatprep.subr.bf16.mxu0 0
      %733 = vmatpush1.bf16.msra.mxu0 %v720
      %734 = vmatprep.subr.bf16.mxu0 0
      %735 = vmatpush1.bf16.msra.mxu0 %v719
      %736 = vmatprep.subr.bf16.mxu0 0
      %737 = vmatpush1.bf16.msra.mxu0 %v718
      %738 = vmatprep.subr.bf16.mxu0 0
      %739 = vmatpush1.bf16.msra.mxu0 %v717
      %740 = vmatprep.subr.bf16.mxu0 0
      %741 = vmatpush1.bf16.msra.mxu0 %v716
      %742 = vmatprep.subr.bf16.mxu0 0
      %743 = vmatpush1.bf16.msra.mxu0 %v715
      %744 = vmatprep.subr.bf16.mxu0 0
      %745 = vmatpush1.bf16.msra.mxu0 %v714
      %746 = vmatprep.subr.bf16.mxu0 0
      %747 = vmatpush2.bf16.msra.mxu0 0
      %748 = vmatprep.subr.bf16.mxu0 0
      %749 = vmatpush2.bf16.msra.mxu0 0
      %750 = vmatprep.subr.bf16.mxu0 0
      %751 = vmatpush2.bf16.msra.mxu0 0
      %752 = vmatprep.subr.bf16.mxu0 0
      %753 = vmatpush2.bf16.msra.mxu0 0
      %754 = vmatprep.subr.bf16.mxu0 0
      %755 = vmatpush2.bf16.msra.mxu0 0
      %756 = vmatprep.subr.bf16.mxu0 0
      %757 = vmatpush2.bf16.msra.mxu0 0
      %758 = vmatprep.subr.bf16.mxu0 0
      %759 = vmatpush2.bf16.msra.mxu0 0
      %760 = vmatprep.subr.bf16.mxu0 0
      %761 = vmatpush2.bf16.msra.mxu0 0
      %762 = vmatprep.mubr.bf16.mxu0 0
      %763 = vmatmul.mubr.bf16.gmra.mxu0 %v441
      %v764 = vpop.f32.mrf.mxu0
      %v765 = vadd.f32 %v680, %v764
      %v766 = vpop.f32.mrf.mxu0
      %v767 = vpop.f32.mrf.mxu0
      %v768 = vadd.f32 %v680, %v767
      %v769 = vpop.f32.mrf.mxu0
      %770 = vdwg.mxu0
      %v771 = vmax.f32 %v765, 0.0
      %v772 = vmax.f32 %v768, 0.0
      %v773 = vpack.c.bf16 %v772, %v771
      %v774 = vld [vmem:[#allocation14] sm:$0xf]
      %v775 = vld [vmem:[#allocation14 + $0x4] sm:$0xf]
      %v776 = vld [vmem:[#allocation14 + $0x8] sm:$0xf]
      %v777 = vld [vmem:[#allocation14 + $0xc] sm:$0xf]
      %v778 = vld [vmem:[#allocation14 + $0x10] sm:$0xf]
      %v779 = vld [vmem:[#allocation14 + $0x14] sm:$0xf]
      %v780 = vld [vmem:[#allocation14 + $0x18] sm:$0xf]
      %v781 = vld [vmem:[#allocation14 + $0x1c] sm:$0xf]
      %v782 = vld [vmem:[#allocation14 + $0x20] sm:$0xf]
      %v783 = vld [vmem:[#allocation14 + $0x24] sm:$0xf]
      %v784 = vld [vmem:[#allocation14 + $0x28] sm:$0xf]
      %v785 = vld [vmem:[#allocation14 + $0x2c] sm:$0xf]
      %v786 = vld [vmem:[#allocation14 + $0x30] sm:$0xf]
      %v787 = vld [vmem:[#allocation14 + $0x34] sm:$0xf]
      %v788 = vld [vmem:[#allocation14 + $0x38] sm:$0xf]
      %v789 = vld [vmem:[#allocation14 + $0x3c] sm:$0xf]
      %v790 = vld [vmem:[%s12] sm:$0x1]
      %v792 = vlaneseq
      %v793 = vshrl.u32 %v792, 7
      %v794 = vsub.s32 0, %v793
      %v795 = vrot.slane %v790, %v794
      %v813 = vunpack.c.l.b16 %v774
      %v814 = vunpack.c.l.b16 %v775
      %v815 = vunpack.c.l.b16 %v776
      %v816 = vunpack.c.l.b16 %v777
      %v817 = vunpack.c.l.b16 %v778
      %v818 = vunpack.c.l.b16 %v779
      %v819 = vunpack.c.l.b16 %v780
      %v820 = vunpack.c.l.b16 %v781
      %v821 = vunpack.c.l.b16 %v782
      %v822 = vunpack.c.l.b16 %v783
      %v823 = vunpack.c.l.b16 %v784
      %v824 = vunpack.c.l.b16 %v785
      %v825 = vunpack.c.l.b16 %v786
      %v826 = vunpack.c.l.b16 %v787
      %v827 = vunpack.c.l.b16 %v788
      %v828 = vunpack.c.l.b16 %v789
      %v829 = vpack.c.b16 %v814, %v813
      %v830 = vpack.c.b16 %v816, %v815
      %v831 = vpack.c.b16 %v818, %v817
      %v832 = vpack.c.b16 %v820, %v819
      %v833 = vpack.c.b16 %v822, %v821
      %v834 = vpack.c.b16 %v824, %v823
      %v835 = vpack.c.b16 %v826, %v825
      %v836 = vpack.c.b16 %v828, %v827
      %845 = vmatprep.subr.bf16.mxu0 0
      %846 = vmatpush1.bf16.msra.mxu0 %v836
      %847 = vmatprep.subr.bf16.mxu0 0
      %848 = vmatpush1.bf16.msra.mxu0 %v835
      %849 = vmatprep.subr.bf16.mxu0 0
      %850 = vmatpush1.bf16.msra.mxu0 %v834
      %851 = vmatprep.subr.bf16.mxu0 0
      %852 = vmatpush1.bf16.msra.mxu0 %v833
      %853 = vmatprep.subr.bf16.mxu0 0
      %854 = vmatpush1.bf16.msra.mxu0 %v832
      %855 = vmatprep.subr.bf16.mxu0 0
      %856 = vmatpush1.bf16.msra.mxu0 %v831
      %857 = vmatprep.subr.bf16.mxu0 0
      %858 = vmatpush1.bf16.msra.mxu0 %v830
      %859 = vmatprep.subr.bf16.mxu0 0
      %860 = vmatpush1.bf16.msra.mxu0 %v829
      %861 = vmatprep.subr.bf16.mxu0 0
      %862 = vmatpush2.bf16.msra.mxu0 0
      %863 = vmatprep.subr.bf16.mxu0 0
      %864 = vmatpush2.bf16.msra.mxu0 0
      %865 = vmatprep.subr.bf16.mxu0 0
      %866 = vmatpush2.bf16.msra.mxu0 0
      %867 = vmatprep.subr.bf16.mxu0 0
      %868 = vmatpush2.bf16.msra.mxu0 0
      %869 = vmatprep.subr.bf16.mxu0 0
      %870 = vmatpush2.bf16.msra.mxu0 0
      %871 = vmatprep.subr.bf16.mxu0 0
      %872 = vmatpush2.bf16.msra.mxu0 0
      %873 = vmatprep.subr.bf16.mxu0 0
      %874 = vmatpush2.bf16.msra.mxu0 0
      %875 = vmatprep.subr.bf16.mxu0 0
      %876 = vmatpush2.bf16.msra.mxu0 0
      %877 = vmatprep.mubr.bf16.mxu0 0
      %878 = vmatmul.mubr.bf16.gmra.mxu0 %v773
      %v879 = vpop.f32.mrf.mxu0
      %v880 = vadd.f32 %v795, %v879
      %v881 = vpop.f32.mrf.mxu0
      %v882 = vpop.f32.mrf.mxu0
      %v883 = vadd.f32 %v795, %v882
      %v884 = vpop.f32.mrf.mxu0
      %885 = vdwg.mxu0
      %v886 = vmax.f32 %v880, 0.0
      %v887 = vmax.f32 %v883, 0.0
      %v888 = vmin.f32 %v886, 1.0
      %v889 = vmin.f32 %v887, 1.0
      %890 = vst [vmem:[#allocation18] sm:$0xff] %v888
      %891 = vst [vmem:[#allocation18 + $0x8] sm:$0xff] %v889
    $region89: #{tpu_custom_call.1} parent=1 // pred_fallthru
      _
    // Predicated region
    $region90: #{tpu_custom_call.1} parent=1 // pred_check
      _
    $region91: #{tpu_custom_call.1} parent=1 // pred_check_branch
      %893 = sbr.rel (0) target = $region93
    $region92: #{tpu_custom_call.1} parent=1 // pred_region
      %s895 = ssub.s32 256, 256
      %896 = vsyncadd [#allocation5], %s895
      %s897 = sshll.u32 [#allocation15], 4
      %s898 = int_to_ptr.vmem [resolvable:$true] %s897
      %903 = dma.vmem_to_hbm [thread:$0]  %s898, 256, %s13, [#allocation5], 128, 128, 8
    $region93: #{tpu_custom_call.1} parent=1 // pred_fallthru
      _
    // Predicated region
    $region94: #{tpu_custom_call.1} parent=1 // pred_check
      _
    $region95: #{tpu_custom_call.1} parent=1 // pred_check_branch
      %905 = sbr.rel (0) target = $region97
    $region96: #{tpu_custom_call.1} parent=1 // pred_region
      %s907 = ssub.s32 256, 256
      %908 = vsyncadd [#allocation17], %s907
      %s909 = sshll.u32 [#allocation16], 4
      %s910 = int_to_ptr.vmem [resolvable:$true] %s909
      %915 = dma.vmem_to_hbm [thread:$0]  %s910, 256, %s14, [#allocation17], 128, 128, 8
    $region97: #{tpu_custom_call.1} parent=1 // pred_fallthru
      _
    // Predicated region
    $region98: #{tpu_custom_call.1} parent=1 // pred_check
      _
    $region99: #{tpu_custom_call.1} parent=1 // pred_check_branch
      %917 = sbr.rel (0) target = $region101
    $region100: #{tpu_custom_call.1} parent=1 // pred_region
      %s919 = ssub.s32 256, 256
      %920 = vsyncadd [#allocation17], %s919
      %s921 = sshll.u32 [#allocation18], 4
      %s922 = int_to_ptr.vmem [resolvable:$true] %s921
      %927 = dma.vmem_to_hbm [thread:$0]  %s922, 256, %s15, [#allocation17], 128, 128, 8
    $region101: #{tpu_custom_call.1} parent=1 // pred_fallthru
      _
    // Predicated region
    $region102: #{tpu_custom_call.1} parent=1 // pred_check
      _
    $region103: #{tpu_custom_call.1} parent=1 // pred_check_branch
      %929 = sbr.rel (0) target = $region105
    $region104: #{tpu_custom_call.1} parent=1 // pred_region
      %930 = dma.done [#allocation5], 256
    $region105: #{tpu_custom_call.1} parent=1 // pred_fallthru
      _
    // Predicated region
    $region106: #{tpu_custom_call.1} parent=1 // pred_check
      _
    $region107: #{tpu_custom_call.1} parent=1 // pred_check_branch
      %932 = sbr.rel (0) target = $region109
    $region108: #{tpu_custom_call.1} parent=1 // pred_region
      %933 = dma.done [#allocation17], 256
    $region109: #{tpu_custom_call.1} parent=1 // pred_fallthru
      _
    // Predicated region
    $region110: #{tpu_custom_call.1} parent=1 // pred_check
      _
    $region111: #{tpu_custom_call.1} parent=1 // pred_check_branch
      %935 = sbr.rel (0) target = $region113
    $region112: #{tpu_custom_call.1} parent=1 // pred_region
      %936 = dma.done [#allocation17], 256
    $region113: #{tpu_custom_call.1} parent=1 // pred_fallthru
      _
    %937 = vsyncpa [#allocation4], 1
    %938 = vsyncpa [#allocation7], 1
    %939 = vsyncpa [#allocation10], 1
    %940 = vsyncpa [#allocation13], 1
    %941 = vsyncpa [#allocation5], 1
    %942 = vsyncpa [#allocation17], 1

</llo_original>
